<compile_context>
chip_gen: v5e
topology: v5e:2x2
jax: 0.10.0
libtpu: 0.0.40
codegen_flags: <defaults>
</compile_context>

<pallas_src>
import functools

import jax
import jax.numpy as jnp
from jax import lax
from jax.experimental import pallas as pl
from jax.experimental.pallas import tpu as pltpu


def _round_up(n, m):
    return ((n + m - 1) // m) * m


def gru_recurrence_kernel(h0_ref, gir_ref, giz_ref, gin_ref,
                          whh_ref, bhn_ref, hseq_ref, h_scr):
    """One grid step == t_blk timesteps.  Hidden state carried in VMEM scratch.

    gi*_ref : (t_blk, Bp, Hp) bf16 input-side gate pre-activations
              (r/z already include b_ih + b_hh; n includes b_ih only).
    whh_ref : (Hp, 3*Hp) fused pre-transposed recurrent weights [Whr^T|Whz^T|Whn^T].
    bhn_ref : (1, Hp) hidden bias of the n gate (n = tanh(i_n + r*(h@Whn + b_hn))).
    hseq_ref: (t_blk, Bp, Hp) f32 hidden-state slab (lane-dense, Hp % 128 == 0).
    h_scr   : (Bp, Hp) f32 hidden carry across grid steps.
    """
    t_blk = gir_ref.shape[0]
    Hp = h_scr.shape[-1]

    @pl.when(pl.program_id(0) == 0)
    def _():
        h_scr[...] = h0_ref[...]

    # Hoisted out of the unrolled loop: JAX does not CSE broadcast_in_dim.
    bhn_b = jnp.broadcast_to(bhn_ref[...].astype(jnp.float32), h_scr.shape)
    mxu_dt = whh_ref.dtype

    def step(i, h):
        # Single fused MXU issue per timestep; gate slices are lane-aligned.
        gh = jnp.dot(h.astype(mxu_dt), whh_ref[...],
                     preferred_element_type=jnp.float32)          # (Bp, 3*Hp)
        gh_r = gh[:, 0:Hp]
        gh_z = gh[:, Hp:2 * Hp]
        gh_n = gh[:, 2 * Hp:3 * Hp]
        r = jax.nn.sigmoid(gir_ref[i].astype(jnp.float32) + gh_r)
        z = jax.nn.sigmoid(giz_ref[i].astype(jnp.float32) + gh_z)
        n = jnp.tanh(gin_ref[i].astype(jnp.float32) + r * (gh_n + bhn_b))
        h_new = (1.0 - z) * n + z * h
        hseq_ref[i] = h_new
        return h_new

    # Capped unroll: keeps LLO scheduler visibility without blowing the vreg file.
    h_final = lax.fori_loop(0, t_blk, step, h_scr[...], unroll=min(t_blk, 8))
    h_scr[...] = h_final


def gru_model_forward(x, target, params, *, t_blk=None,
                      mxu_dtype=jnp.bfloat16, stream_dtype=jnp.bfloat16):
    """x: (B, T, I) batch_first, target: (B, T, O).  Returns (out (B,T,O), hn (1,B,H))."""
    B, T, I = x.shape
    O, H = params["output_to_hidden"].shape

    if t_blk is None:
        t_blk = T                       # demo: single grid step over all timesteps
    assert T % t_blk == 0, "T must be divisible by t_blk"
    num_blocks = T // t_blk

    Bp = _round_up(max(B, 8), 8)        # fill the f32 sublane tile
    Hp = _round_up(max(H, 128), 128)    # lane-dense gate slices & stores

    wih = params["weight_ih"]           # (3H, I)
    whh = params["weight_hh"]           # (3H, H)
    bih = params["bias_ih"]             # (3H,)
    bhh = params["bias_hh"]             # (3H,)

    # h0 = tanh(target[:,0,:] @ output_to_hidden) — off the recurrent path.
    h0 = jnp.tanh(target[:, 0, :] @ params["output_to_hidden"])            # (B, H)
    h0_p = jnp.pad(h0, ((0, Bp - B), (0, Hp - H))).astype(jnp.float32)

    # Time-parallel input projection as one big matmul (time-major output layout).
    gi = jnp.einsum("bti,gi->tbg", x, wih) + bih[None, None, :]            # (T, B, 3H)
    gi_r = gi[..., 0:H] + bhh[0:H]
    gi_z = gi[..., H:2 * H] + bhh[H:2 * H]
    gi_n = gi[..., 2 * H:3 * H]

    def pad_tb(g):                      # zero-pad batch/hidden; padded lanes stay 0 in the recurrence
        return jnp.pad(g, ((0, 0), (0, Bp - B), (0, Hp - H))).astype(stream_dtype)

    gi_r, gi_z, gi_n = pad_tb(gi_r), pad_tb(gi_z), pad_tb(gi_n)            # (T, Bp, Hp)

    # Fused, padded, pre-transposed recurrent weights: (Hp, 3*Hp).
    def pad_hh(w):                      # w: (H, H) gate block of weight_hh
        return jnp.pad(w.T, ((0, Hp - H), (0, Hp - H)))

    whh_all = jnp.concatenate(
        [pad_hh(whh[0:H]), pad_hh(whh[H:2 * H]), pad_hh(whh[2 * H:3 * H])],
        axis=1).astype(mxu_dtype)                                          # (Hp, 3*Hp)
    bhn_p = jnp.pad(bhh[2 * H:3 * H], (0, Hp - H))[None, :].astype(jnp.float32)

    full = lambda shape: pl.BlockSpec(shape, lambda b: tuple(0 for _ in shape))
    tb_spec = pl.BlockSpec((t_blk, Bp, Hp), lambda b: (b, 0, 0))

    # VMEM budget: weights + double-buffered gi / output blocks + scratch, capped < v7x 64 MiB.
    stream_b = jnp.dtype(stream_dtype).itemsize
    mxu_b = jnp.dtype(mxu_dtype).itemsize
    footprint = (2 * Hp * 3 * Hp * mxu_b          # fused weights (double-buffered)
                 + 3 * 2 * t_blk * Bp * Hp * stream_b   # gi streams
                 + 2 * t_blk * Bp * Hp * 4              # output slab
                 + 4 * Bp * Hp * 4)                     # h0 + carry scratch + slack
    vmem_limit = int(min(48 * 1024 * 1024, max(4 * footprint, 8 * 1024 * 1024)))

    h_seq = pl.pallas_call(
        gru_recurrence_kernel,
        out_shape=jax.ShapeDtypeStruct((T, Bp, Hp), jnp.float32),
        grid_spec=pltpu.PrefetchScalarGridSpec(
            num_scalar_prefetch=0,
            grid=(num_blocks,),
            in_specs=[
                full((Bp, Hp)),                  # h0
                tb_spec, tb_spec, tb_spec,       # gi_r, gi_z, gi_n (streamed per time-block)
                full((Hp, 3 * Hp)),              # fused W_hh (resident)
                full((1, Hp)),                   # b_hn
            ],
            out_specs=tb_spec,                   # lane-dense hidden-state slab
            scratch_shapes=[pltpu.VMEM((Bp, Hp), jnp.float32)],   # f32 hidden carry
        ),
        compiler_params=pltpu.CompilerParams(
            dimension_semantics=("arbitrary",),  # recurrence over time is sequential
            vmem_limit_bytes=vmem_limit),
    )(h0_p, gi_r, gi_z, gi_n, whh_all, bhn_p)

    h_seq = h_seq[:, :B, :H]                     # drop batch/hidden padding

    # fc head (dropout = identity in eval) + transpose back to batch-first.
    out = jnp.einsum("tbh,oh->bto", h_seq, params["fc_weight"]) + params["fc_bias"]
    hn = h_seq[T - 1][None]                      # (1, B, H)
    return out.astype(x.dtype), hn.astype(x.dtype)


def reference_forward(x, target, params):
    """Pure-JAX f32 reference replicating the PyTorch semantics (eval mode)."""
    H = params["weight_hh"].shape[1]
    h0 = jnp.tanh(target[:, 0, :] @ params["output_to_hidden"])

    wih_t = params["weight_ih"].T
    whh_t = params["weight_hh"].T

    def cell(h, xt):
        gi = xt @ wih_t + params["bias_ih"]
        gh = h @ whh_t + params["bias_hh"]
        i_r, i_z, i_n = gi[:, :H], gi[:, H:2 * H], gi[:, 2 * H:]
        h_r, h_z, h_n = gh[:, :H], gh[:, H:2 * H], gh[:, 2 * H:]
        r = jax.nn.sigmoid(i_r + h_r)
        z = jax.nn.sigmoid(i_z + h_z)
        n = jnp.tanh(i_n + r * h_n)
        h_new = (1.0 - z) * n + z * h
        return h_new, h_new

    hn, outs = lax.scan(cell, h0, jnp.transpose(x, (1, 0, 2)))
    out = jnp.transpose(outs, (1, 0, 2)) @ params["fc_weight"].T + params["fc_bias"]
    return out, hn[None]


def init_params(key, input_size, hidden_size, output_size):
    stdv = 1.0 / jnp.sqrt(hidden_size)
    ks = jax.random.split(key, 8)
    u = lambda k, shape: jax.random.uniform(k, shape, jnp.float32, -stdv, stdv)
    return {
        "output_to_hidden": u(ks[0], (output_size, hidden_size)),
        "weight_ih": u(ks[1], (3 * hidden_size, input_size)),
        "weight_hh": u(ks[2], (3 * hidden_size, hidden_size)),
        "bias_ih": u(ks[3], (3 * hidden_size,)),
        "bias_hh": u(ks[4], (3 * hidden_size,)),
        "fc_weight": u(ks[5], (output_size, hidden_size)),
        "fc_bias": u(ks[6], (output_size,)),
    }


if __name__ == "__main__":
    B, T, I, H, O = 4, 8, 16, 32, 8
    key = jax.random.PRNGKey(0)
    k_x, k_t, k_p = jax.random.split(key, 3)

    x = jax.random.normal(k_x, (B, T, I), jnp.float32)
    target = jax.random.normal(k_t, (B, T, O), jnp.float32)
    params = init_params(k_p, I, H, O)

    fwd = jax.jit(functools.partial(gru_model_forward, t_blk=T))
    out, hn = fwd(x, target, params)
    jax.block_until_ready((out, hn))

    out_ref, hn_ref = reference_forward(x, target, params)
    assert out.shape == (B, T, O) and hn.shape == (1, B, H)
    # bf16 MXU operands / bf16 gi streaming (f32 accumulation) -> relaxed tolerance.
    assert jnp.allclose(out, out_ref, atol=3e-2, rtol=3e-2), \
        float(jnp.max(jnp.abs(out - out_ref)))
    assert jnp.allclose(hn, hn_ref, atol=3e-2, rtol=3e-2), \
        float(jnp.max(jnp.abs(hn - hn_ref)))

    print("KERNEL_OK")
</pallas_src>

<mosaic_0001>
module attributes {stable_mosaic.version = 11 : i64} {
  func.func @gru_recurrence_kernel(%arg0: i32, %arg1: memref<8x128xf32, #tpu.memory_space<vmem>>, %arg2: memref<8x8x128xbf16, #tpu.memory_space<vmem>>, %arg3: memref<8x8x128xbf16, #tpu.memory_space<vmem>>, %arg4: memref<8x8x128xbf16, #tpu.memory_space<vmem>>, %arg5: memref<128x384xbf16, #tpu.memory_space<vmem>>, %arg6: memref<1x128xf32, #tpu.memory_space<vmem>>, %arg7: memref<8x8x128xf32, #tpu.memory_space<vmem>>, %arg8: memref<8x128xf32, #tpu.memory_space<vmem>>) attributes {dimension_semantics = [#tpu.dimension_semantics<arbitrary>], iteration_bounds = array<i64: 1>, scalar_prefetch = 0 : i64, scratch_operands = 1 : i64, tpu.core_type = #tpu.core_type<tc>, window_params = [{pipeline_mode = #tpu.pipeline_mode<synchronous>, transform_indices = @transform_0, window_bounds = array<i64: 8, 128>}, {transform_indices = @transform_1, window_bounds = array<i64: 8, 8, 128>}, {transform_indices = @transform_2, window_bounds = array<i64: 8, 8, 128>}, {transform_indices = @transform_3, window_bounds = array<i64: 8, 8, 128>}, {pipeline_mode = #tpu.pipeline_mode<synchronous>, transform_indices = @transform_4, window_bounds = array<i64: 128, 384>}, {pipeline_mode = #tpu.pipeline_mode<synchronous>, transform_indices = @transform_5, window_bounds = array<i64: 1, 128>}, {transform_indices = @transform_6, window_bounds = array<i64: 8, 8, 128>}]} {
    %c0_i32 = arith.constant 0 : i32
    %0 = arith.cmpi eq, %arg0, %c0_i32 : i32
    %1 = arith.extui %0 : i1 to i32
    %c0_i32_0 = arith.constant 0 : i32
    %2 = arith.cmpi ne, %1, %c0_i32_0 : i32
    scf.if %2 {
      %c0_118 = arith.constant 0 : index
      %c0_119 = arith.constant 0 : index
      %352 = vector.load %arg1[%c0_118, %c0_119] : memref<8x128xf32, #tpu.memory_space<vmem>>, vector<8x128xf32>
      %c0_120 = arith.constant 0 : index
      %c0_121 = arith.constant 0 : index
      %353 = vector.load %arg8[%c0_120, %c0_121] : memref<8x128xf32, #tpu.memory_space<vmem>>, vector<8x128xf32>
      tpu.vector_store %arg8[%c0_120, %c0_121], %352 {strides = array<i32>} : memref<8x128xf32, #tpu.memory_space<vmem>>, vector<8x128xf32>,
    } else {
    }
    %c0 = arith.constant 0 : index
    %c0_1 = arith.constant 0 : index
    %3 = vector.load %arg6[%c0, %c0_1] : memref<1x128xf32, #tpu.memory_space<vmem>>, vector<1x128xf32>
    %4 = vector.shape_cast %3 : vector<1x128xf32> to vector<1x128xf32>
    %5 = vector.broadcast %4 : vector<1x128xf32> to vector<8x128xf32>
    %c0_2 = arith.constant 0 : index
    %c0_3 = arith.constant 0 : index
    %6 = vector.load %arg8[%c0_2, %c0_3] : memref<8x128xf32, #tpu.memory_space<vmem>>, vector<8x128xf32>
    %c0_i32_4 = arith.constant 0 : i32
    %7 = arith.truncf %6 : vector<8x128xf32> to vector<8x128xbf16>
    %c0_5 = arith.constant 0 : index
    %c0_6 = arith.constant 0 : index
    %8 = vector.load %arg5[%c0_5, %c0_6] : memref<128x384xbf16, #tpu.memory_space<vmem>>, vector<128x384xbf16>
    %cst = arith.constant dense<0.000000e+00> : vector<8x384xf32>
    %9 = tpu.matmul %7, %8, %cst {dimension_numbers = #tpu.dot_dimension_numbers<[1], [0], [0], [1], [0, 0, 1, 1], [], []>} : vector<8x128xbf16>, vector<128x384xbf16>, vector<8x384xf32> -> vector<8x384xf32>
    %10 = vector.extract_strided_slice %9 {offsets = [0, 0], sizes = [8, 128], strides = [1, 1]} : vector<8x384xf32> to vector<8x128xf32>
    %11 = vector.extract_strided_slice %9 {offsets = [0, 128], sizes = [8, 128], strides = [1, 1]} : vector<8x384xf32> to vector<8x128xf32>
    %12 = vector.extract_strided_slice %9 {offsets = [0, 256], sizes = [8, 128], strides = [1, 1]} : vector<8x384xf32> to vector<8x128xf32>
    %13 = arith.index_cast %c0_i32_4 : i32 to index
    %c0_7 = arith.constant 0 : index
    %c0_8 = arith.constant 0 : index
    %14 = vector.load %arg2[%13, %c0_7, %c0_8] : memref<8x8x128xbf16, #tpu.memory_space<vmem>>, vector<1x8x128xbf16>
    %15 = vector.shape_cast %14 : vector<1x8x128xbf16> to vector<8x128xbf16>
    %16 = arith.extf %15 : vector<8x128xbf16> to vector<8x128xf32>
    %17 = arith.addf %16, %10 : vector<8x128xf32>
    %18 = arith.negf %17 : vector<8x128xf32>
    %19 = math.exp %18 : vector<8x128xf32>
    %cst_9 = arith.constant 1.000000e+00 : f32
    %20 = vector.broadcast %cst_9 : f32 to vector<8x128xf32>
    %21 = arith.addf %20, %19 : vector<8x128xf32>
    %22 = arith.divf %20, %21 : vector<8x128xf32>
    %23 = arith.index_cast %c0_i32_4 : i32 to index
    %c0_10 = arith.constant 0 : index
    %c0_11 = arith.constant 0 : index
    %24 = vector.load %arg3[%23, %c0_10, %c0_11] : memref<8x8x128xbf16, #tpu.memory_space<vmem>>, vector<1x8x128xbf16>
    %25 = vector.shape_cast %24 : vector<1x8x128xbf16> to vector<8x128xbf16>
    %26 = arith.extf %25 : vector<8x128xbf16> to vector<8x128xf32>
    %27 = arith.addf %26, %11 : vector<8x128xf32>
    %28 = arith.negf %27 : vector<8x128xf32>
    %29 = math.exp %28 : vector<8x128xf32>
    %cst_12 = arith.constant 1.000000e+00 : f32
    %30 = vector.broadcast %cst_12 : f32 to vector<8x128xf32>
    %31 = arith.addf %30, %29 : vector<8x128xf32>
    %32 = arith.divf %30, %31 : vector<8x128xf32>
    %33 = arith.index_cast %c0_i32_4 : i32 to index
    %c0_13 = arith.constant 0 : index
    %c0_14 = arith.constant 0 : index
    %34 = vector.load %arg4[%33, %c0_13, %c0_14] : memref<8x8x128xbf16, #tpu.memory_space<vmem>>, vector<1x8x128xbf16>
    %35 = vector.shape_cast %34 : vector<1x8x128xbf16> to vector<8x128xbf16>
    %36 = arith.extf %35 : vector<8x128xbf16> to vector<8x128xf32>
    %37 = arith.addf %12, %5 : vector<8x128xf32>
    %38 = arith.mulf %22, %37 : vector<8x128xf32>
    %39 = arith.addf %36, %38 : vector<8x128xf32>
    %40 = math.tanh %39 : vector<8x128xf32>
    %cst_15 = arith.constant 1.000000e+00 : f32
    %41 = vector.broadcast %cst_15 : f32 to vector<8x128xf32>
    %42 = arith.subf %41, %32 : vector<8x128xf32>
    %43 = arith.mulf %42, %40 : vector<8x128xf32>
    %44 = arith.mulf %32, %6 : vector<8x128xf32>
    %45 = arith.addf %43, %44 : vector<8x128xf32>
    %46 = arith.index_cast %c0_i32_4 : i32 to index
    %c0_16 = arith.constant 0 : index
    %c0_17 = arith.constant 0 : index
    %47 = vector.load %arg7[%46, %c0_16, %c0_17] : memref<8x8x128xf32, #tpu.memory_space<vmem>>, vector<1x8x128xf32>
    %48 = vector.shape_cast %47 : vector<1x8x128xf32> to vector<8x128xf32>
    %49 = vector.shape_cast %45 : vector<8x128xf32> to vector<1x8x128xf32>
    tpu.vector_store %arg7[%46, %c0_16, %c0_17], %49 {strides = array<i32>} : memref<8x8x128xf32, #tpu.memory_space<vmem>>, vector<1x8x128xf32>,
    %c1_i32 = arith.constant 1 : i32
    %50 = arith.truncf %45 : vector<8x128xf32> to vector<8x128xbf16>
    %c0_18 = arith.constant 0 : index
    %c0_19 = arith.constant 0 : index
    %51 = vector.load %arg5[%c0_18, %c0_19] : memref<128x384xbf16, #tpu.memory_space<vmem>>, vector<128x384xbf16>
    %cst_20 = arith.constant dense<0.000000e+00> : vector<8x384xf32>
    %52 = tpu.matmul %50, %51, %cst_20 {dimension_numbers = #tpu.dot_dimension_numbers<[1], [0], [0], [1], [0, 0, 1, 1], [], []>} : vector<8x128xbf16>, vector<128x384xbf16>, vector<8x384xf32> -> vector<8x384xf32>
    %53 = vector.extract_strided_slice %52 {offsets = [0, 0], sizes = [8, 128], strides = [1, 1]} : vector<8x384xf32> to vector<8x128xf32>
    %54 = vector.extract_strided_slice %52 {offsets = [0, 128], sizes = [8, 128], strides = [1, 1]} : vector<8x384xf32> to vector<8x128xf32>
    %55 = vector.extract_strided_slice %52 {offsets = [0, 256], sizes = [8, 128], strides = [1, 1]} : vector<8x384xf32> to vector<8x128xf32>
    %56 = arith.index_cast %c1_i32 : i32 to index
    %c0_21 = arith.constant 0 : index
    %c0_22 = arith.constant 0 : index
    %57 = vector.load %arg2[%56, %c0_21, %c0_22] : memref<8x8x128xbf16, #tpu.memory_space<vmem>>, vector<1x8x128xbf16>
    %58 = vector.shape_cast %57 : vector<1x8x128xbf16> to vector<8x128xbf16>
    %59 = arith.extf %58 : vector<8x128xbf16> to vector<8x128xf32>
    %60 = arith.addf %59, %53 : vector<8x128xf32>
    %61 = arith.negf %60 : vector<8x128xf32>
    %62 = math.exp %61 : vector<8x128xf32>
    %cst_23 = arith.constant 1.000000e+00 : f32
    %63 = vector.broadcast %cst_23 : f32 to vector<8x128xf32>
    %64 = arith.addf %63, %62 : vector<8x128xf32>
    %65 = arith.divf %63, %64 : vector<8x128xf32>
    %66 = arith.index_cast %c1_i32 : i32 to index
    %c0_24 = arith.constant 0 : index
    %c0_25 = arith.constant 0 : index
    %67 = vector.load %arg3[%66, %c0_24, %c0_25] : memref<8x8x128xbf16, #tpu.memory_space<vmem>>, vector<1x8x128xbf16>
    %68 = vector.shape_cast %67 : vector<1x8x128xbf16> to vector<8x128xbf16>
    %69 = arith.extf %68 : vector<8x128xbf16> to vector<8x128xf32>
    %70 = arith.addf %69, %54 : vector<8x128xf32>
    %71 = arith.negf %70 : vector<8x128xf32>
    %72 = math.exp %71 : vector<8x128xf32>
    %cst_26 = arith.constant 1.000000e+00 : f32
    %73 = vector.broadcast %cst_26 : f32 to vector<8x128xf32>
    %74 = arith.addf %73, %72 : vector<8x128xf32>
    %75 = arith.divf %73, %74 : vector<8x128xf32>
    %76 = arith.index_cast %c1_i32 : i32 to index
    %c0_27 = arith.constant 0 : index
    %c0_28 = arith.constant 0 : index
    %77 = vector.load %arg4[%76, %c0_27, %c0_28] : memref<8x8x128xbf16, #tpu.memory_space<vmem>>, vector<1x8x128xbf16>
    %78 = vector.shape_cast %77 : vector<1x8x128xbf16> to vector<8x128xbf16>
    %79 = arith.extf %78 : vector<8x128xbf16> to vector<8x128xf32>
    %80 = arith.addf %55, %5 : vector<8x128xf32>
    %81 = arith.mulf %65, %80 : vector<8x128xf32>
    %82 = arith.addf %79, %81 : vector<8x128xf32>
    %83 = math.tanh %82 : vector<8x128xf32>
    %cst_29 = arith.constant 1.000000e+00 : f32
    %84 = vector.broadcast %cst_29 : f32 to vector<8x128xf32>
    %85 = arith.subf %84, %75 : vector<8x128xf32>
    %86 = arith.mulf %85, %83 : vector<8x128xf32>
    %87 = arith.mulf %75, %45 : vector<8x128xf32>
    %88 = arith.addf %86, %87 : vector<8x128xf32>
    %89 = arith.index_cast %c1_i32 : i32 to index
    %c0_30 = arith.constant 0 : index
    %c0_31 = arith.constant 0 : index
    %90 = vector.load %arg7[%89, %c0_30, %c0_31] : memref<8x8x128xf32, #tpu.memory_space<vmem>>, vector<1x8x128xf32>
    %91 = vector.shape_cast %90 : vector<1x8x128xf32> to vector<8x128xf32>
    %92 = vector.shape_cast %88 : vector<8x128xf32> to vector<1x8x128xf32>
    tpu.vector_store %arg7[%89, %c0_30, %c0_31], %92 {strides = array<i32>} : memref<8x8x128xf32, #tpu.memory_space<vmem>>, vector<1x8x128xf32>,
    %c2_i32 = arith.constant 2 : i32
    %93 = arith.truncf %88 : vector<8x128xf32> to vector<8x128xbf16>
    %c0_32 = arith.constant 0 : index
    %c0_33 = arith.constant 0 : index
    %94 = vector.load %arg5[%c0_32, %c0_33] : memref<128x384xbf16, #tpu.memory_space<vmem>>, vector<128x384xbf16>
    %cst_34 = arith.constant dense<0.000000e+00> : vector<8x384xf32>
    %95 = tpu.matmul %93, %94, %cst_34 {dimension_numbers = #tpu.dot_dimension_numbers<[1], [0], [0], [1], [0, 0, 1, 1], [], []>} : vector<8x128xbf16>, vector<128x384xbf16>, vector<8x384xf32> -> vector<8x384xf32>
    %96 = vector.extract_strided_slice %95 {offsets = [0, 0], sizes = [8, 128], strides = [1, 1]} : vector<8x384xf32> to vector<8x128xf32>
    %97 = vector.extract_strided_slice %95 {offsets = [0, 128], sizes = [8, 128], strides = [1, 1]} : vector<8x384xf32> to vector<8x128xf32>
    %98 = vector.extract_strided_slice %95 {offsets = [0, 256], sizes = [8, 128], strides = [1, 1]} : vector<8x384xf32> to vector<8x128xf32>
    %99 = arith.index_cast %c2_i32 : i32 to index
    %c0_35 = arith.constant 0 : index
    %c0_36 = arith.constant 0 : index
    %100 = vector.load %arg2[%99, %c0_35, %c0_36] : memref<8x8x128xbf16, #tpu.memory_space<vmem>>, vector<1x8x128xbf16>
    %101 = vector.shape_cast %100 : vector<1x8x128xbf16> to vector<8x128xbf16>
    %102 = arith.extf %101 : vector<8x128xbf16> to vector<8x128xf32>
    %103 = arith.addf %102, %96 : vector<8x128xf32>
    %104 = arith.negf %103 : vector<8x128xf32>
    %105 = math.exp %104 : vector<8x128xf32>
    %cst_37 = arith.constant 1.000000e+00 : f32
    %106 = vector.broadcast %cst_37 : f32 to vector<8x128xf32>
    %107 = arith.addf %106, %105 : vector<8x128xf32>
    %108 = arith.divf %106, %107 : vector<8x128xf32>
    %109 = arith.index_cast %c2_i32 : i32 to index
    %c0_38 = arith.constant 0 : index
    %c0_39 = arith.constant 0 : index
    %110 = vector.load %arg3[%109, %c0_38, %c0_39] : memref<8x8x128xbf16, #tpu.memory_space<vmem>>, vector<1x8x128xbf16>
    %111 = vector.shape_cast %110 : vector<1x8x128xbf16> to vector<8x128xbf16>
    %112 = arith.extf %111 : vector<8x128xbf16> to vector<8x128xf32>
    %113 = arith.addf %112, %97 : vector<8x128xf32>
    %114 = arith.negf %113 : vector<8x128xf32>
    %115 = math.exp %114 : vector<8x128xf32>
    %cst_40 = arith.constant 1.000000e+00 : f32
    %116 = vector.broadcast %cst_40 : f32 to vector<8x128xf32>
    %117 = arith.addf %116, %115 : vector<8x128xf32>
    %118 = arith.divf %116, %117 : vector<8x128xf32>
    %119 = arith.index_cast %c2_i32 : i32 to index
    %c0_41 = arith.constant 0 : index
    %c0_42 = arith.constant 0 : index
    %120 = vector.load %arg4[%119, %c0_41, %c0_42] : memref<8x8x128xbf16, #tpu.memory_space<vmem>>, vector<1x8x128xbf16>
    %121 = vector.shape_cast %120 : vector<1x8x128xbf16> to vector<8x128xbf16>
    %122 = arith.extf %121 : vector<8x128xbf16> to vector<8x128xf32>
    %123 = arith.addf %98, %5 : vector<8x128xf32>
    %124 = arith.mulf %108, %123 : vector<8x128xf32>
    %125 = arith.addf %122, %124 : vector<8x128xf32>
    %126 = math.tanh %125 : vector<8x128xf32>
    %cst_43 = arith.constant 1.000000e+00 : f32
    %127 = vector.broadcast %cst_43 : f32 to vector<8x128xf32>
    %128 = arith.subf %127, %118 : vector<8x128xf32>
    %129 = arith.mulf %128, %126 : vector<8x128xf32>
    %130 = arith.mulf %118, %88 : vector<8x128xf32>
    %131 = arith.addf %129, %130 : vector<8x128xf32>
    %132 = arith.index_cast %c2_i32 : i32 to index
    %c0_44 = arith.constant 0 : index
    %c0_45 = arith.constant 0 : index
    %133 = vector.load %arg7[%132, %c0_44, %c0_45] : memref<8x8x128xf32, #tpu.memory_space<vmem>>, vector<1x8x128xf32>
    %134 = vector.shape_cast %133 : vector<1x8x128xf32> to vector<8x128xf32>
    %135 = vector.shape_cast %131 : vector<8x128xf32> to vector<1x8x128xf32>
    tpu.vector_store %arg7[%132, %c0_44, %c0_45], %135 {strides = array<i32>} : memref<8x8x128xf32, #tpu.memory_space<vmem>>, vector<1x8x128xf32>,
    %c3_i32 = arith.constant 3 : i32
    %136 = arith.truncf %131 : vector<8x128xf32> to vector<8x128xbf16>
    %c0_46 = arith.constant 0 : index
    %c0_47 = arith.constant 0 : index
    %137 = vector.load %arg5[%c0_46, %c0_47] : memref<128x384xbf16, #tpu.memory_space<vmem>>, vector<128x384xbf16>
    %cst_48 = arith.constant dense<0.000000e+00> : vector<8x384xf32>
    %138 = tpu.matmul %136, %137, %cst_48 {dimension_numbers = #tpu.dot_dimension_numbers<[1], [0], [0], [1], [0, 0, 1, 1], [], []>} : vector<8x128xbf16>, vector<128x384xbf16>, vector<8x384xf32> -> vector<8x384xf32>
    %139 = vector.extract_strided_slice %138 {offsets = [0, 0], sizes = [8, 128], strides = [1, 1]} : vector<8x384xf32> to vector<8x128xf32>
    %140 = vector.extract_strided_slice %138 {offsets = [0, 128], sizes = [8, 128], strides = [1, 1]} : vector<8x384xf32> to vector<8x128xf32>
    %141 = vector.extract_strided_slice %138 {offsets = [0, 256], sizes = [8, 128], strides = [1, 1]} : vector<8x384xf32> to vector<8x128xf32>
    %142 = arith.index_cast %c3_i32 : i32 to index
    %c0_49 = arith.constant 0 : index
    %c0_50 = arith.constant 0 : index
    %143 = vector.load %arg2[%142, %c0_49, %c0_50] : memref<8x8x128xbf16, #tpu.memory_space<vmem>>, vector<1x8x128xbf16>
    %144 = vector.shape_cast %143 : vector<1x8x128xbf16> to vector<8x128xbf16>
    %145 = arith.extf %144 : vector<8x128xbf16> to vector<8x128xf32>
    %146 = arith.addf %145, %139 : vector<8x128xf32>
    %147 = arith.negf %146 : vector<8x128xf32>
    %148 = math.exp %147 : vector<8x128xf32>
    %cst_51 = arith.constant 1.000000e+00 : f32
    %149 = vector.broadcast %cst_51 : f32 to vector<8x128xf32>
    %150 = arith.addf %149, %148 : vector<8x128xf32>
    %151 = arith.divf %149, %150 : vector<8x128xf32>
    %152 = arith.index_cast %c3_i32 : i32 to index
    %c0_52 = arith.constant 0 : index
    %c0_53 = arith.constant 0 : index
    %153 = vector.load %arg3[%152, %c0_52, %c0_53] : memref<8x8x128xbf16, #tpu.memory_space<vmem>>, vector<1x8x128xbf16>
    %154 = vector.shape_cast %153 : vector<1x8x128xbf16> to vector<8x128xbf16>
    %155 = arith.extf %154 : vector<8x128xbf16> to vector<8x128xf32>
    %156 = arith.addf %155, %140 : vector<8x128xf32>
    %157 = arith.negf %156 : vector<8x128xf32>
    %158 = math.exp %157 : vector<8x128xf32>
    %cst_54 = arith.constant 1.000000e+00 : f32
    %159 = vector.broadcast %cst_54 : f32 to vector<8x128xf32>
    %160 = arith.addf %159, %158 : vector<8x128xf32>
    %161 = arith.divf %159, %160 : vector<8x128xf32>
    %162 = arith.index_cast %c3_i32 : i32 to index
    %c0_55 = arith.constant 0 : index
    %c0_56 = arith.constant 0 : index
    %163 = vector.load %arg4[%162, %c0_55, %c0_56] : memref<8x8x128xbf16, #tpu.memory_space<vmem>>, vector<1x8x128xbf16>
    %164 = vector.shape_cast %163 : vector<1x8x128xbf16> to vector<8x128xbf16>
    %165 = arith.extf %164 : vector<8x128xbf16> to vector<8x128xf32>
    %166 = arith.addf %141, %5 : vector<8x128xf32>
    %167 = arith.mulf %151, %166 : vector<8x128xf32>
    %168 = arith.addf %165, %167 : vector<8x128xf32>
    %169 = math.tanh %168 : vector<8x128xf32>
    %cst_57 = arith.constant 1.000000e+00 : f32
    %170 = vector.broadcast %cst_57 : f32 to vector<8x128xf32>
    %171 = arith.subf %170, %161 : vector<8x128xf32>
    %172 = arith.mulf %171, %169 : vector<8x128xf32>
    %173 = arith.mulf %161, %131 : vector<8x128xf32>
    %174 = arith.addf %172, %173 : vector<8x128xf32>
    %175 = arith.index_cast %c3_i32 : i32 to index
    %c0_58 = arith.constant 0 : index
    %c0_59 = arith.constant 0 : index
    %176 = vector.load %arg7[%175, %c0_58, %c0_59] : memref<8x8x128xf32, #tpu.memory_space<vmem>>, vector<1x8x128xf32>
    %177 = vector.shape_cast %176 : vector<1x8x128xf32> to vector<8x128xf32>
    %178 = vector.shape_cast %174 : vector<8x128xf32> to vector<1x8x128xf32>
    tpu.vector_store %arg7[%175, %c0_58, %c0_59], %178 {strides = array<i32>} : memref<8x8x128xf32, #tpu.memory_space<vmem>>, vector<1x8x128xf32>,
    %c4_i32 = arith.constant 4 : i32
    %179 = arith.truncf %174 : vector<8x128xf32> to vector<8x128xbf16>
    %c0_60 = arith.constant 0 : index
    %c0_61 = arith.constant 0 : index
    %180 = vector.load %arg5[%c0_60, %c0_61] : memref<128x384xbf16, #tpu.memory_space<vmem>>, vector<128x384xbf16>
    %cst_62 = arith.constant dense<0.000000e+00> : vector<8x384xf32>
    %181 = tpu.matmul %179, %180, %cst_62 {dimension_numbers = #tpu.dot_dimension_numbers<[1], [0], [0], [1], [0, 0, 1, 1], [], []>} : vector<8x128xbf16>, vector<128x384xbf16>, vector<8x384xf32> -> vector<8x384xf32>
    %182 = vector.extract_strided_slice %181 {offsets = [0, 0], sizes = [8, 128], strides = [1, 1]} : vector<8x384xf32> to vector<8x128xf32>
    %183 = vector.extract_strided_slice %181 {offsets = [0, 128], sizes = [8, 128], strides = [1, 1]} : vector<8x384xf32> to vector<8x128xf32>
    %184 = vector.extract_strided_slice %181 {offsets = [0, 256], sizes = [8, 128], strides = [1, 1]} : vector<8x384xf32> to vector<8x128xf32>
    %185 = arith.index_cast %c4_i32 : i32 to index
    %c0_63 = arith.constant 0 : index
    %c0_64 = arith.constant 0 : index
    %186 = vector.load %arg2[%185, %c0_63, %c0_64] : memref<8x8x128xbf16, #tpu.memory_space<vmem>>, vector<1x8x128xbf16>
    %187 = vector.shape_cast %186 : vector<1x8x128xbf16> to vector<8x128xbf16>
    %188 = arith.extf %187 : vector<8x128xbf16> to vector<8x128xf32>
    %189 = arith.addf %188, %182 : vector<8x128xf32>
    %190 = arith.negf %189 : vector<8x128xf32>
    %191 = math.exp %190 : vector<8x128xf32>
    %cst_65 = arith.constant 1.000000e+00 : f32
    %192 = vector.broadcast %cst_65 : f32 to vector<8x128xf32>
    %193 = arith.addf %192, %191 : vector<8x128xf32>
    %194 = arith.divf %192, %193 : vector<8x128xf32>
    %195 = arith.index_cast %c4_i32 : i32 to index
    %c0_66 = arith.constant 0 : index
    %c0_67 = arith.constant 0 : index
    %196 = vector.load %arg3[%195, %c0_66, %c0_67] : memref<8x8x128xbf16, #tpu.memory_space<vmem>>, vector<1x8x128xbf16>
    %197 = vector.shape_cast %196 : vector<1x8x128xbf16> to vector<8x128xbf16>
    %198 = arith.extf %197 : vector<8x128xbf16> to vector<8x128xf32>
    %199 = arith.addf %198, %183 : vector<8x128xf32>
    %200 = arith.negf %199 : vector<8x128xf32>
    %201 = math.exp %200 : vector<8x128xf32>
    %cst_68 = arith.constant 1.000000e+00 : f32
    %202 = vector.broadcast %cst_68 : f32 to vector<8x128xf32>
    %203 = arith.addf %202, %201 : vector<8x128xf32>
    %204 = arith.divf %202, %203 : vector<8x128xf32>
    %205 = arith.index_cast %c4_i32 : i32 to index
    %c0_69 = arith.constant 0 : index
    %c0_70 = arith.constant 0 : index
    %206 = vector.load %arg4[%205, %c0_69, %c0_70] : memref<8x8x128xbf16, #tpu.memory_space<vmem>>, vector<1x8x128xbf16>
    %207 = vector.shape_cast %206 : vector<1x8x128xbf16> to vector<8x128xbf16>
    %208 = arith.extf %207 : vector<8x128xbf16> to vector<8x128xf32>
    %209 = arith.addf %184, %5 : vector<8x128xf32>
    %210 = arith.mulf %194, %209 : vector<8x128xf32>
    %211 = arith.addf %208, %210 : vector<8x128xf32>
    %212 = math.tanh %211 : vector<8x128xf32>
    %cst_71 = arith.constant 1.000000e+00 : f32
    %213 = vector.broadcast %cst_71 : f32 to vector<8x128xf32>
    %214 = arith.subf %213, %204 : vector<8x128xf32>
    %215 = arith.mulf %214, %212 : vector<8x128xf32>
    %216 = arith.mulf %204, %174 : vector<8x128xf32>
    %217 = arith.addf %215, %216 : vector<8x128xf32>
    %218 = arith.index_cast %c4_i32 : i32 to index
    %c0_72 = arith.constant 0 : index
    %c0_73 = arith.constant 0 : index
    %219 = vector.load %arg7[%218, %c0_72, %c0_73] : memref<8x8x128xf32, #tpu.memory_space<vmem>>, vector<1x8x128xf32>
    %220 = vector.shape_cast %219 : vector<1x8x128xf32> to vector<8x128xf32>
    %221 = vector.shape_cast %217 : vector<8x128xf32> to vector<1x8x128xf32>
    tpu.vector_store %arg7[%218, %c0_72, %c0_73], %221 {strides = array<i32>} : memref<8x8x128xf32, #tpu.memory_space<vmem>>, vector<1x8x128xf32>,
    %c5_i32 = arith.constant 5 : i32
    %222 = arith.truncf %217 : vector<8x128xf32> to vector<8x128xbf16>
    %c0_74 = arith.constant 0 : index
    %c0_75 = arith.constant 0 : index
    %223 = vector.load %arg5[%c0_74, %c0_75] : memref<128x384xbf16, #tpu.memory_space<vmem>>, vector<128x384xbf16>
    %cst_76 = arith.constant dense<0.000000e+00> : vector<8x384xf32>
    %224 = tpu.matmul %222, %223, %cst_76 {dimension_numbers = #tpu.dot_dimension_numbers<[1], [0], [0], [1], [0, 0, 1, 1], [], []>} : vector<8x128xbf16>, vector<128x384xbf16>, vector<8x384xf32> -> vector<8x384xf32>
    %225 = vector.extract_strided_slice %224 {offsets = [0, 0], sizes = [8, 128], strides = [1, 1]} : vector<8x384xf32> to vector<8x128xf32>
    %226 = vector.extract_strided_slice %224 {offsets = [0, 128], sizes = [8, 128], strides = [1, 1]} : vector<8x384xf32> to vector<8x128xf32>
    %227 = vector.extract_strided_slice %224 {offsets = [0, 256], sizes = [8, 128], strides = [1, 1]} : vector<8x384xf32> to vector<8x128xf32>
    %228 = arith.index_cast %c5_i32 : i32 to index
    %c0_77 = arith.constant 0 : index
    %c0_78 = arith.constant 0 : index
    %229 = vector.load %arg2[%228, %c0_77, %c0_78] : memref<8x8x128xbf16, #tpu.memory_space<vmem>>, vector<1x8x128xbf16>
    %230 = vector.shape_cast %229 : vector<1x8x128xbf16> to vector<8x128xbf16>
    %231 = arith.extf %230 : vector<8x128xbf16> to vector<8x128xf32>
    %232 = arith.addf %231, %225 : vector<8x128xf32>
    %233 = arith.negf %232 : vector<8x128xf32>
    %234 = math.exp %233 : vector<8x128xf32>
    %cst_79 = arith.constant 1.000000e+00 : f32
    %235 = vector.broadcast %cst_79 : f32 to vector<8x128xf32>
    %236 = arith.addf %235, %234 : vector<8x128xf32>
    %237 = arith.divf %235, %236 : vector<8x128xf32>
    %238 = arith.index_cast %c5_i32 : i32 to index
    %c0_80 = arith.constant 0 : index
    %c0_81 = arith.constant 0 : index
    %239 = vector.load %arg3[%238, %c0_80, %c0_81] : memref<8x8x128xbf16, #tpu.memory_space<vmem>>, vector<1x8x128xbf16>
    %240 = vector.shape_cast %239 : vector<1x8x128xbf16> to vector<8x128xbf16>
    %241 = arith.extf %240 : vector<8x128xbf16> to vector<8x128xf32>
    %242 = arith.addf %241, %226 : vector<8x128xf32>
    %243 = arith.negf %242 : vector<8x128xf32>
    %244 = math.exp %243 : vector<8x128xf32>
    %cst_82 = arith.constant 1.000000e+00 : f32
    %245 = vector.broadcast %cst_82 : f32 to vector<8x128xf32>
    %246 = arith.addf %245, %244 : vector<8x128xf32>
    %247 = arith.divf %245, %246 : vector<8x128xf32>
    %248 = arith.index_cast %c5_i32 : i32 to index
    %c0_83 = arith.constant 0 : index
    %c0_84 = arith.constant 0 : index
    %249 = vector.load %arg4[%248, %c0_83, %c0_84] : memref<8x8x128xbf16, #tpu.memory_space<vmem>>, vector<1x8x128xbf16>
    %250 = vector.shape_cast %249 : vector<1x8x128xbf16> to vector<8x128xbf16>
    %251 = arith.extf %250 : vector<8x128xbf16> to vector<8x128xf32>
    %252 = arith.addf %227, %5 : vector<8x128xf32>
    %253 = arith.mulf %237, %252 : vector<8x128xf32>
    %254 = arith.addf %251, %253 : vector<8x128xf32>
    %255 = math.tanh %254 : vector<8x128xf32>
    %cst_85 = arith.constant 1.000000e+00 : f32
    %256 = vector.broadcast %cst_85 : f32 to vector<8x128xf32>
    %257 = arith.subf %256, %247 : vector<8x128xf32>
    %258 = arith.mulf %257, %255 : vector<8x128xf32>
    %259 = arith.mulf %247, %217 : vector<8x128xf32>
    %260 = arith.addf %258, %259 : vector<8x128xf32>
    %261 = arith.index_cast %c5_i32 : i32 to index
    %c0_86 = arith.constant 0 : index
    %c0_87 = arith.constant 0 : index
    %262 = vector.load %arg7[%261, %c0_86, %c0_87] : memref<8x8x128xf32, #tpu.memory_space<vmem>>, vector<1x8x128xf32>
    %263 = vector.shape_cast %262 : vector<1x8x128xf32> to vector<8x128xf32>
    %264 = vector.shape_cast %260 : vector<8x128xf32> to vector<1x8x128xf32>
    tpu.vector_store %arg7[%261, %c0_86, %c0_87], %264 {strides = array<i32>} : memref<8x8x128xf32, #tpu.memory_space<vmem>>, vector<1x8x128xf32>,
    %c6_i32 = arith.constant 6 : i32
    %265 = arith.truncf %260 : vector<8x128xf32> to vector<8x128xbf16>
    %c0_88 = arith.constant 0 : index
    %c0_89 = arith.constant 0 : index
    %266 = vector.load %arg5[%c0_88, %c0_89] : memref<128x384xbf16, #tpu.memory_space<vmem>>, vector<128x384xbf16>
    %cst_90 = arith.constant dense<0.000000e+00> : vector<8x384xf32>
    %267 = tpu.matmul %265, %266, %cst_90 {dimension_numbers = #tpu.dot_dimension_numbers<[1], [0], [0], [1], [0, 0, 1, 1], [], []>} : vector<8x128xbf16>, vector<128x384xbf16>, vector<8x384xf32> -> vector<8x384xf32>
    %268 = vector.extract_strided_slice %267 {offsets = [0, 0], sizes = [8, 128], strides = [1, 1]} : vector<8x384xf32> to vector<8x128xf32>
    %269 = vector.extract_strided_slice %267 {offsets = [0, 128], sizes = [8, 128], strides = [1, 1]} : vector<8x384xf32> to vector<8x128xf32>
    %270 = vector.extract_strided_slice %267 {offsets = [0, 256], sizes = [8, 128], strides = [1, 1]} : vector<8x384xf32> to vector<8x128xf32>
    %271 = arith.index_cast %c6_i32 : i32 to index
    %c0_91 = arith.constant 0 : index
    %c0_92 = arith.constant 0 : index
    %272 = vector.load %arg2[%271, %c0_91, %c0_92] : memref<8x8x128xbf16, #tpu.memory_space<vmem>>, vector<1x8x128xbf16>
    %273 = vector.shape_cast %272 : vector<1x8x128xbf16> to vector<8x128xbf16>
    %274 = arith.extf %273 : vector<8x128xbf16> to vector<8x128xf32>
    %275 = arith.addf %274, %268 : vector<8x128xf32>
    %276 = arith.negf %275 : vector<8x128xf32>
    %277 = math.exp %276 : vector<8x128xf32>
    %cst_93 = arith.constant 1.000000e+00 : f32
    %278 = vector.broadcast %cst_93 : f32 to vector<8x128xf32>
    %279 = arith.addf %278, %277 : vector<8x128xf32>
    %280 = arith.divf %278, %279 : vector<8x128xf32>
    %281 = arith.index_cast %c6_i32 : i32 to index
    %c0_94 = arith.constant 0 : index
    %c0_95 = arith.constant 0 : index
    %282 = vector.load %arg3[%281, %c0_94, %c0_95] : memref<8x8x128xbf16, #tpu.memory_space<vmem>>, vector<1x8x128xbf16>
    %283 = vector.shape_cast %282 : vector<1x8x128xbf16> to vector<8x128xbf16>
    %284 = arith.extf %283 : vector<8x128xbf16> to vector<8x128xf32>
    %285 = arith.addf %284, %269 : vector<8x128xf32>
    %286 = arith.negf %285 : vector<8x128xf32>
    %287 = math.exp %286 : vector<8x128xf32>
    %cst_96 = arith.constant 1.000000e+00 : f32
    %288 = vector.broadcast %cst_96 : f32 to vector<8x128xf32>
    %289 = arith.addf %288, %287 : vector<8x128xf32>
    %290 = arith.divf %288, %289 : vector<8x128xf32>
    %291 = arith.index_cast %c6_i32 : i32 to index
    %c0_97 = arith.constant 0 : index
    %c0_98 = arith.constant 0 : index
    %292 = vector.load %arg4[%291, %c0_97, %c0_98] : memref<8x8x128xbf16, #tpu.memory_space<vmem>>, vector<1x8x128xbf16>
    %293 = vector.shape_cast %292 : vector<1x8x128xbf16> to vector<8x128xbf16>
    %294 = arith.extf %293 : vector<8x128xbf16> to vector<8x128xf32>
    %295 = arith.addf %270, %5 : vector<8x128xf32>
    %296 = arith.mulf %280, %295 : vector<8x128xf32>
    %297 = arith.addf %294, %296 : vector<8x128xf32>
    %298 = math.tanh %297 : vector<8x128xf32>
    %cst_99 = arith.constant 1.000000e+00 : f32
    %299 = vector.broadcast %cst_99 : f32 to vector<8x128xf32>
    %300 = arith.subf %299, %290 : vector<8x128xf32>
    %301 = arith.mulf %300, %298 : vector<8x128xf32>
    %302 = arith.mulf %290, %260 : vector<8x128xf32>
    %303 = arith.addf %301, %302 : vector<8x128xf32>
    %304 = arith.index_cast %c6_i32 : i32 to index
    %c0_100 = arith.constant 0 : index
    %c0_101 = arith.constant 0 : index
    %305 = vector.load %arg7[%304, %c0_100, %c0_101] : memref<8x8x128xf32, #tpu.memory_space<vmem>>, vector<1x8x128xf32>
    %306 = vector.shape_cast %305 : vector<1x8x128xf32> to vector<8x128xf32>
    %307 = vector.shape_cast %303 : vector<8x128xf32> to vector<1x8x128xf32>
    tpu.vector_store %arg7[%304, %c0_100, %c0_101], %307 {strides = array<i32>} : memref<8x8x128xf32, #tpu.memory_space<vmem>>, vector<1x8x128xf32>,
    %c7_i32 = arith.constant 7 : i32
    %308 = arith.truncf %303 : vector<8x128xf32> to vector<8x128xbf16>
    %c0_102 = arith.constant 0 : index
    %c0_103 = arith.constant 0 : index
    %309 = vector.load %arg5[%c0_102, %c0_103] : memref<128x384xbf16, #tpu.memory_space<vmem>>, vector<128x384xbf16>
    %cst_104 = arith.constant dense<0.000000e+00> : vector<8x384xf32>
    %310 = tpu.matmul %308, %309, %cst_104 {dimension_numbers = #tpu.dot_dimension_numbers<[1], [0], [0], [1], [0, 0, 1, 1], [], []>} : vector<8x128xbf16>, vector<128x384xbf16>, vector<8x384xf32> -> vector<8x384xf32>
    %311 = vector.extract_strided_slice %310 {offsets = [0, 0], sizes = [8, 128], strides = [1, 1]} : vector<8x384xf32> to vector<8x128xf32>
    %312 = vector.extract_strided_slice %310 {offsets = [0, 128], sizes = [8, 128], strides = [1, 1]} : vector<8x384xf32> to vector<8x128xf32>
    %313 = vector.extract_strided_slice %310 {offsets = [0, 256], sizes = [8, 128], strides = [1, 1]} : vector<8x384xf32> to vector<8x128xf32>
    %314 = arith.index_cast %c7_i32 : i32 to index
    %c0_105 = arith.constant 0 : index
    %c0_106 = arith.constant 0 : index
    %315 = vector.load %arg2[%314, %c0_105, %c0_106] : memref<8x8x128xbf16, #tpu.memory_space<vmem>>, vector<1x8x128xbf16>
    %316 = vector.shape_cast %315 : vector<1x8x128xbf16> to vector<8x128xbf16>
    %317 = arith.extf %316 : vector<8x128xbf16> to vector<8x128xf32>
    %318 = arith.addf %317, %311 : vector<8x128xf32>
    %319 = arith.negf %318 : vector<8x128xf32>
    %320 = math.exp %319 : vector<8x128xf32>
    %cst_107 = arith.constant 1.000000e+00 : f32
    %321 = vector.broadcast %cst_107 : f32 to vector<8x128xf32>
    %322 = arith.addf %321, %320 : vector<8x128xf32>
    %323 = arith.divf %321, %322 : vector<8x128xf32>
    %324 = arith.index_cast %c7_i32 : i32 to index
    %c0_108 = arith.constant 0 : index
    %c0_109 = arith.constant 0 : index
    %325 = vector.load %arg3[%324, %c0_108, %c0_109] : memref<8x8x128xbf16, #tpu.memory_space<vmem>>, vector<1x8x128xbf16>
    %326 = vector.shape_cast %325 : vector<1x8x128xbf16> to vector<8x128xbf16>
    %327 = arith.extf %326 : vector<8x128xbf16> to vector<8x128xf32>
    %328 = arith.addf %327, %312 : vector<8x128xf32>
    %329 = arith.negf %328 : vector<8x128xf32>
    %330 = math.exp %329 : vector<8x128xf32>
    %cst_110 = arith.constant 1.000000e+00 : f32
    %331 = vector.broadcast %cst_110 : f32 to vector<8x128xf32>
    %332 = arith.addf %331, %330 : vector<8x128xf32>
    %333 = arith.divf %331, %332 : vector<8x128xf32>
    %334 = arith.index_cast %c7_i32 : i32 to index
    %c0_111 = arith.constant 0 : index
    %c0_112 = arith.constant 0 : index
    %335 = vector.load %arg4[%334, %c0_111, %c0_112] : memref<8x8x128xbf16, #tpu.memory_space<vmem>>, vector<1x8x128xbf16>
    %336 = vector.shape_cast %335 : vector<1x8x128xbf16> to vector<8x128xbf16>
    %337 = arith.extf %336 : vector<8x128xbf16> to vector<8x128xf32>
    %338 = arith.addf %313, %5 : vector<8x128xf32>
    %339 = arith.mulf %323, %338 : vector<8x128xf32>
    %340 = arith.addf %337, %339 : vector<8x128xf32>
    %341 = math.tanh %340 : vector<8x128xf32>
    %cst_113 = arith.constant 1.000000e+00 : f32
    %342 = vector.broadcast %cst_113 : f32 to vector<8x128xf32>
    %343 = arith.subf %342, %333 : vector<8x128xf32>
    %344 = arith.mulf %343, %341 : vector<8x128xf32>
    %345 = arith.mulf %333, %303 : vector<8x128xf32>
    %346 = arith.addf %344, %345 : vector<8x128xf32>
    %347 = arith.index_cast %c7_i32 : i32 to index
    %c0_114 = arith.constant 0 : index
    %c0_115 = arith.constant 0 : index
    %348 = vector.load %arg7[%347, %c0_114, %c0_115] : memref<8x8x128xf32, #tpu.memory_space<vmem>>, vector<1x8x128xf32>
    %349 = vector.shape_cast %348 : vector<1x8x128xf32> to vector<8x128xf32>
    %350 = vector.shape_cast %346 : vector<8x128xf32> to vector<1x8x128xf32>
    tpu.vector_store %arg7[%347, %c0_114, %c0_115], %350 {strides = array<i32>} : memref<8x8x128xf32, #tpu.memory_space<vmem>>, vector<1x8x128xf32>,
    %c8_i32 = arith.constant 8 : i32
    %c0_116 = arith.constant 0 : index
    %c0_117 = arith.constant 0 : index
    %351 = vector.load %arg8[%c0_116, %c0_117] : memref<8x128xf32, #tpu.memory_space<vmem>>, vector<8x128xf32>
    tpu.vector_store %arg8[%c0_116, %c0_117], %346 {strides = array<i32>} : memref<8x128xf32, #tpu.memory_space<vmem>>, vector<8x128xf32>,
    return
  }
  func.func @transform_0(%arg0: i32) -> (i32, i32) {
    %c0_i32 = arith.constant 0 : i32
    %c0_i32_0 = arith.constant 0 : i32
    %c0_i32_1 = arith.constant 0 : i32
    return %c0_i32, %c0_i32_0 : i32, i32
  }
  func.func @transform_1(%arg0: i32) -> (i32, i32, i32) {
    %c0_i32 = arith.constant 0 : i32
    %c0_i32_0 = arith.constant 0 : i32
    %c0_i32_1 = arith.constant 0 : i32
    return %arg0, %c0_i32, %c0_i32_0 : i32, i32, i32
  }
  func.func @transform_2(%arg0: i32) -> (i32, i32, i32) {
    %c0_i32 = arith.constant 0 : i32
    %c0_i32_0 = arith.constant 0 : i32
    %c0_i32_1 = arith.constant 0 : i32
    return %arg0, %c0_i32, %c0_i32_0 : i32, i32, i32
  }
  func.func @transform_3(%arg0: i32) -> (i32, i32, i32) {
    %c0_i32 = arith.constant 0 : i32
    %c0_i32_0 = arith.constant 0 : i32
    %c0_i32_1 = arith.constant 0 : i32
    return %arg0, %c0_i32, %c0_i32_0 : i32, i32, i32
  }
  func.func @transform_4(%arg0: i32) -> (i32, i32) {
    %c0_i32 = arith.constant 0 : i32
    %c0_i32_0 = arith.constant 0 : i32
    %c0_i32_1 = arith.constant 0 : i32
    return %c0_i32, %c0_i32_0 : i32, i32
  }
  func.func @transform_5(%arg0: i32) -> (i32, i32) {
    %c0_i32 = arith.constant 0 : i32
    %c0_i32_0 = arith.constant 0 : i32
    %c0_i32_1 = arith.constant 0 : i32
    return %c0_i32, %c0_i32_0 : i32, i32
  }
  func.func @transform_6(%arg0: i32) -> (i32, i32, i32) {
    %c0_i32 = arith.constant 0 : i32
    %c0_i32_0 = arith.constant 0 : i32
    %c0_i32_1 = arith.constant 0 : i32
    return %arg0, %c0_i32, %c0_i32_0 : i32, i32, i32
  }
}

</mosaic_0001>

<llo_original>
// kernel: gru_model_forward.1
$region0: #{gru_model_forward.1}
  #allocation0 [shape = 'u32[]', space=smem, size = 0x4, offset = 0x4, fixed_abs, tag = 'smem constant byte address 0x4 - core index']
  #allocation1 [shape = 'u32[72,128]{1,0:T(1,128)}', space=vmem, size = 0x9000, scoped, tag = 'internal scratch']
  #allocation2 [shape = 'f32[8,128]{1,0:T(8,128)}', space=vmem, size = 0x1000, scoped, tag = 'scratch operand']
  %s0 = inlined_call_operand.vmem [shape: f32[8,128], index: 0, kind: input, shape index: {}]
  %s1 = inlined_call_operand.vmem [shape: bf16[8,8,128], index: 1, kind: input, shape index: {}]
  %s2 = inlined_call_operand.vmem [shape: bf16[8,8,128], index: 2, kind: input, shape index: {}]
  %s3 = inlined_call_operand.vmem [shape: bf16[8,8,128], index: 3, kind: input, shape index: {}]
  %s4 = inlined_call_operand.vmem [shape: bf16[128,384], index: 4, kind: input, shape index: {}]
  %s5 = inlined_call_operand.vmem [shape: f32[1,128], index: 5, kind: input, shape index: {}]
  %s6 = inlined_call_operand.vmem [shape: f32[8,8,128], index: 6, kind: output, shape index: {}]
  %s7 = sld [smem:[#allocation0]]
  $region38: #{gru_model_forward.1} parent=0
    _
  %s9 = ssub.s32 1, %s7
  %s10 = scalar_select 0, %s9, %s7
  // Predicated region
  $region2: #{gru_model_forward.1} parent=0 // pred_check
    _
  $region3: #{gru_model_forward.1} parent=0 // pred_check_branch
    %12 = sbr.rel (0) target = $region5
  $region4: #{gru_model_forward.1} parent=0 // pred_region
    _
  $region5: #{gru_model_forward.1} parent=0 // pred_fallthru
    _
  // Predicated region
  $region6: #{gru_model_forward.1} parent=0 // pred_check
    _
  $region7: #{gru_model_forward.1} parent=0 // pred_check_branch
    %14 = sbr.rel (0) target = $region9
  $region8: #{gru_model_forward.1} parent=0 // pred_region
    _
  $region9: #{gru_model_forward.1} parent=0 // pred_fallthru
    _
  // Predicated region
  $region10: #{gru_model_forward.1} parent=0 // pred_check
    _
  $region11: #{gru_model_forward.1} parent=0 // pred_check_branch
    %16 = sbr.rel (0) target = $region13
  $region12: #{gru_model_forward.1} parent=0 // pred_region
    _
  $region13: #{gru_model_forward.1} parent=0 // pred_fallthru
    _
  // Predicated region
  $region14: #{gru_model_forward.1} parent=0 // pred_check
    _
  $region15: #{gru_model_forward.1} parent=0 // pred_check_branch
    %18 = sbr.rel (0) target = $region17
  $region16: #{gru_model_forward.1} parent=0 // pred_region
    _
  $region17: #{gru_model_forward.1} parent=0 // pred_fallthru
    _
  // Predicated region
  $region18: #{gru_model_forward.1} parent=0 // pred_check
    _
  $region19: #{gru_model_forward.1} parent=0 // pred_check_branch
    %20 = sbr.rel (0) target = $region21
  $region20: #{gru_model_forward.1} parent=0 // pred_region
    _
  $region21: #{gru_model_forward.1} parent=0 // pred_fallthru
    _
  // Predicated region
  $region22: #{gru_model_forward.1} parent=0 // pred_check
    _
  $region23: #{gru_model_forward.1} parent=0 // pred_check_branch
    %22 = sbr.rel (0) target = $region25
  $region24: #{gru_model_forward.1} parent=0 // pred_region
    _
  $region25: #{gru_model_forward.1} parent=0 // pred_fallthru
    _
  %p23 = scmp.eq.s32.totalorder 0, 0
  // Predicated region
  $region26: #{gru_model_forward.1} parent=0 // pred_check
    %p24 = pneg %p23
  $region27: #{gru_model_forward.1} parent=0 // pred_check_branch
    %26 = sbr.rel (%p24) target = $region29
  $region28: #{gru_model_forward.1} parent=0 // pred_region
    %v27 = vld [vmem:[%s0] sm:$0xff]
    %28 = vst [vmem:[#allocation2] sm:$0xff] %v27
  $region29: #{gru_model_forward.1} parent=0 // pred_fallthru
    _
  %v29 = vld [vmem:[%s5] sm:$0x1]
  %v31 = vperm.slane %v29, 0
  %v33 = vld [vmem:[#allocation2] sm:$0xff]
  %v34 = vpack.c.bf16 %v33, %v33
  %v35 = vld [vmem:[%s4] sm:$0xff]
  %v36 = vld [vmem:[%s4 + $0x8] sm:$0xf]
  %v37 = vld [vmem:[%s4 + $0xc] sm:$0xff]
  %v38 = vld [vmem:[%s4 + $0x14] sm:$0xf]
  %v39 = vld [vmem:[%s4 + $0x18] sm:$0xff]
  %v40 = vld [vmem:[%s4 + $0x20] sm:$0xf]
  %v41 = vld [vmem:[%s4 + $0x24] sm:$0xff]
  %v42 = vld [vmem:[%s4 + $0x2c] sm:$0xf]
  %v43 = vld [vmem:[%s4 + $0x30] sm:$0xff]
  %v44 = vld [vmem:[%s4 + $0x38] sm:$0xf]
  %v45 = vld [vmem:[%s4 + $0x3c] sm:$0xff]
  %v46 = vld [vmem:[%s4 + $0x44] sm:$0xf]
  %v47 = vld [vmem:[%s4 + $0x48] sm:$0xff]
  %v48 = vld [vmem:[%s4 + $0x50] sm:$0xf]
  %v49 = vld [vmem:[%s4 + $0x54] sm:$0xff]
  %v50 = vld [vmem:[%s4 + $0x5c] sm:$0xf]
  %v51 = vld [vmem:[%s4 + $0x60] sm:$0xff]
  %v52 = vld [vmem:[%s4 + $0x68] sm:$0xf]
  %v53 = vld [vmem:[%s4 + $0x6c] sm:$0xff]
  %v54 = vld [vmem:[%s4 + $0x74] sm:$0xf]
  %v55 = vld [vmem:[%s4 + $0x78] sm:$0xff]
  %v56 = vld [vmem:[%s4 + $0x80] sm:$0xf]
  %v57 = vld [vmem:[%s4 + $0x84] sm:$0xff]
  %v58 = vld [vmem:[%s4 + $0x8c] sm:$0xf]
  %v59 = vld [vmem:[%s4 + $0x90] sm:$0xff]
  %v60 = vld [vmem:[%s4 + $0x98] sm:$0xf]
  %v61 = vld [vmem:[%s4 + $0x9c] sm:$0xff]
  %v62 = vld [vmem:[%s4 + $0xa4] sm:$0xf]
  %v63 = vld [vmem:[%s4 + $0xa8] sm:$0xff]
  %v64 = vld [vmem:[%s4 + $0xb0] sm:$0xf]
  %v65 = vld [vmem:[%s4 + $0xb4] sm:$0xff]
  %v66 = vld [vmem:[%s4 + $0xbc] sm:$0xf]
  %v99 = vunpack.c.l.b16 %v35
  %v100 = vunpack.c.h.b16 %v35
  %v101 = vunpack.c.l.b16 %v36
  %v102 = vunpack.c.l.b16 %v37
  %v103 = vunpack.c.h.b16 %v37
  %v104 = vunpack.c.l.b16 %v38
  %v105 = vunpack.c.l.b16 %v39
  %v106 = vunpack.c.h.b16 %v39
  %v107 = vunpack.c.l.b16 %v40
  %v108 = vunpack.c.l.b16 %v41
  %v109 = vunpack.c.h.b16 %v41
  %v110 = vunpack.c.l.b16 %v42
  %v111 = vunpack.c.l.b16 %v43
  %v112 = vunpack.c.h.b16 %v43
  %v113 = vunpack.c.l.b16 %v44
  %v114 = vunpack.c.l.b16 %v45
  %v115 = vunpack.c.h.b16 %v45
  %v116 = vunpack.c.l.b16 %v46
  %v117 = vunpack.c.l.b16 %v47
  %v118 = vunpack.c.h.b16 %v47
  %v119 = vunpack.c.l.b16 %v48
  %v120 = vunpack.c.l.b16 %v49
  %v121 = vunpack.c.h.b16 %v49
  %v122 = vunpack.c.l.b16 %v50
  %v123 = vunpack.c.l.b16 %v51
  %v124 = vunpack.c.h.b16 %v51
  %v125 = vunpack.c.l.b16 %v52
  %v126 = vunpack.c.l.b16 %v53
  %v127 = vunpack.c.h.b16 %v53
  %v128 = vunpack.c.l.b16 %v54
  %v129 = vunpack.c.l.b16 %v55
  %v130 = vunpack.c.h.b16 %v55
  %v131 = vunpack.c.l.b16 %v56
  %v132 = vunpack.c.l.b16 %v57
  %v133 = vunpack.c.h.b16 %v57
  %v134 = vunpack.c.l.b16 %v58
  %v135 = vunpack.c.l.b16 %v59
  %v136 = vunpack.c.h.b16 %v59
  %v137 = vunpack.c.l.b16 %v60
  %v138 = vunpack.c.l.b16 %v61
  %v139 = vunpack.c.h.b16 %v61
  %v140 = vunpack.c.l.b16 %v62
  %v141 = vunpack.c.l.b16 %v63
  %v142 = vunpack.c.h.b16 %v63
  %v143 = vunpack.c.l.b16 %v64
  %v144 = vunpack.c.l.b16 %v65
  %v145 = vunpack.c.h.b16 %v65
  %v146 = vunpack.c.l.b16 %v66
  %v147 = vpack.c.b16 %v102, %v99
  %v148 = vpack.c.b16 %v103, %v100
  %v149 = vpack.c.b16 %v104, %v101
  %v150 = vpack.c.b16 %v108, %v105
  %v151 = vpack.c.b16 %v109, %v106
  %v152 = vpack.c.b16 %v110, %v107
  %v153 = vpack.c.b16 %v114, %v111
  %v154 = vpack.c.b16 %v115, %v112
  %v155 = vpack.c.b16 %v116, %v113
  %v156 = vpack.c.b16 %v120, %v117
  %v157 = vpack.c.b16 %v121, %v118
  %v158 = vpack.c.b16 %v122, %v119
  %v159 = vpack.c.b16 %v126, %v123
  %v160 = vpack.c.b16 %v127, %v124
  %v161 = vpack.c.b16 %v128, %v125
  %v162 = vpack.c.b16 %v132, %v129
  %v163 = vpack.c.b16 %v133, %v130
  %v164 = vpack.c.b16 %v134, %v131
  %v165 = vpack.c.b16 %v138, %v135
  %v166 = vpack.c.b16 %v139, %v136
  %v167 = vpack.c.b16 %v140, %v137
  %v168 = vpack.c.b16 %v144, %v141
  %v169 = vpack.c.b16 %v145, %v142
  %v170 = vpack.c.b16 %v146, %v143
  %195 = vmatpush.bf16.msra.mxu0 %v168
  %196 = vmatpush.bf16.msra.mxu0 %v165
  %197 = vmatpush.bf16.msra.mxu0 %v162
  %198 = vmatpush.bf16.msra.mxu0 %v159
  %199 = vmatpush.bf16.msra.mxu0 %v156
  %200 = vmatpush.bf16.msra.mxu0 %v153
  %201 = vmatpush.bf16.msra.mxu0 %v150
  %202 = vmatpush.bf16.msra.mxu0 %v147
  %203 = vmatmul.bf16.gmra.mxu0 %v34
  %v204 = vpop.f32.mrf.mxu0
  %v205 = vadd.f32 0.0, %v204
  %v206 = vpop.f32.mrf.mxu0
  %207 = vdwg.mxu0
  %208 = vmatpush.bf16.msra.mxu0 %v169
  %209 = vmatpush.bf16.msra.mxu0 %v166
  %210 = vmatpush.bf16.msra.mxu0 %v163
  %211 = vmatpush.bf16.msra.mxu0 %v160
  %212 = vmatpush.bf16.msra.mxu0 %v157
  %213 = vmatpush.bf16.msra.mxu0 %v154
  %214 = vmatpush.bf16.msra.mxu0 %v151
  %215 = vmatpush.bf16.msra.mxu0 %v148
  %216 = vmatmul.bf16.gmra.mxu0 %v34
  %v217 = vpop.f32.mrf.mxu0
  %v218 = vadd.f32 0.0, %v217
  %v219 = vpop.f32.mrf.mxu0
  %220 = vdwg.mxu0
  %221 = vmatpush.bf16.msra.mxu0 %v170
  %222 = vmatpush.bf16.msra.mxu0 %v167
  %223 = vmatpush.bf16.msra.mxu0 %v164
  %224 = vmatpush.bf16.msra.mxu0 %v161
  %225 = vmatpush.bf16.msra.mxu0 %v158
  %226 = vmatpush.bf16.msra.mxu0 %v155
  %227 = vmatpush.bf16.msra.mxu0 %v152
  %228 = vmatpush.bf16.msra.mxu0 %v149
  %229 = vmatmul.bf16.gmra.mxu0 %v34
  %v230 = vpop.f32.mrf.mxu0
  %v231 = vadd.f32 0.0, %v230
  %v232 = vpop.f32.mrf.mxu0
  %233 = vdwg.mxu0
  %v234 = vld [vmem:[%s1] sm:$0xf]
  %v235 = vunpack.c.l.bf16 %v234
  %v236 = vadd.f32 %v235, %v205
  %v237 = vxor.u32 %v236, 2147483648
  %v238 = vmul.f32 %v237, 1.442695
  %v239 = vpow.pop %v238
  %v240 = vadd.f32 %v239, 1.0
  %v241 = vrcp.pop %v240
  %v242 = vmul.f32 %v240, %v241
  %v243 = vsub.f32 1.0, %v242
  %v244 = vmul.f32 %v241, %v243
  %v245 = vadd.f32 %v241, %v244
  %vm246 = vweird.f32 %v240
  %vm247 = vweird.f32 %v241
  %vm248 = vmor %vm246, %vm247
  %v249 = vsel %vm248, %v241, %v245
  %v250 = vand.u32 2147483647, %v240
  %vm251 = vcmp.eq.f32.partialorder %v250, 8.507059e+37
  %v252 = vand.u32 %v240, 2147483648
  %v253 = vor.u32 1.1754944e-38, %v252
  %v254 = vsel %vm251, %v253, %v249
  %v255 = vmul.f32 1.0, %v254
  %v256 = vld [vmem:[%s2] sm:$0xf]
  %v257 = vunpack.c.l.bf16 %v256
  %v258 = vadd.f32 %v257, %v218
  %v259 = vxor.u32 %v258, 2147483648
  %v260 = vmul.f32 %v259, 1.442695
  %v261 = vpow.pop %v260
  %v262 = vadd.f32 %v261, 1.0
  %v263 = vrcp.pop %v262
  %v264 = vmul.f32 %v262, %v263
  %v265 = vsub.f32 1.0, %v264
  %v266 = vmul.f32 %v263, %v265
  %v267 = vadd.f32 %v263, %v266
  %vm268 = vweird.f32 %v262
  %vm269 = vweird.f32 %v263
  %vm270 = vmor %vm268, %vm269
  %v271 = vsel %vm270, %v263, %v267
  %v272 = vand.u32 2147483647, %v262
  %vm273 = vcmp.eq.f32.partialorder %v272, 8.507059e+37
  %v274 = vand.u32 %v262, 2147483648
  %v275 = vor.u32 1.1754944e-38, %v274
  %v276 = vsel %vm273, %v275, %v271
  %v277 = vmul.f32 1.0, %v276
  %v278 = vld [vmem:[%s3] sm:$0xf]
  %v279 = vunpack.c.l.bf16 %v278
  %v280 = vadd.f32 %v231, %v31
  %v281 = vmul.f32 %v255, %v280
  %v282 = vadd.f32 %v279, %v281
  %v283 = vtanh.pop %v282
  %v284 = vsub.f32 1.0, %v277
  %v285 = vmul.f32 %v284, %v283
  %v286 = vmul.f32 %v277, %v33
  %v287 = vadd.f32 %v285, %v286
  %288 = vst [vmem:[%s6] sm:$0xff] %v287
  %v289 = vpack.c.bf16 %v287, %v287
  %v290 = vld [vmem:[%s4] sm:$0xff]
  %v291 = vld [vmem:[%s4 + $0x8] sm:$0xf]
  %v292 = vld [vmem:[%s4 + $0xc] sm:$0xff]
  %v293 = vld [vmem:[%s4 + $0x14] sm:$0xf]
  %v294 = vld [vmem:[%s4 + $0x18] sm:$0xff]
  %v295 = vld [vmem:[%s4 + $0x20] sm:$0xf]
  %v296 = vld [vmem:[%s4 + $0x24] sm:$0xff]
  %v297 = vld [vmem:[%s4 + $0x2c] sm:$0xf]
  %v298 = vld [vmem:[%s4 + $0x30] sm:$0xff]
  %v299 = vld [vmem:[%s4 + $0x38] sm:$0xf]
  %v300 = vld [vmem:[%s4 + $0x3c] sm:$0xff]
  %v301 = vld [vmem:[%s4 + $0x44] sm:$0xf]
  %v302 = vld [vmem:[%s4 + $0x48] sm:$0xff]
  %v303 = vld [vmem:[%s4 + $0x50] sm:$0xf]
  %v304 = vld [vmem:[%s4 + $0x54] sm:$0xff]
  %v305 = vld [vmem:[%s4 + $0x5c] sm:$0xf]
  %v306 = vld [vmem:[%s4 + $0x60] sm:$0xff]
  %v307 = vld [vmem:[%s4 + $0x68] sm:$0xf]
  %v308 = vld [vmem:[%s4 + $0x6c] sm:$0xff]
  %v309 = vld [vmem:[%s4 + $0x74] sm:$0xf]
  %v310 = vld [vmem:[%s4 + $0x78] sm:$0xff]
  %v311 = vld [vmem:[%s4 + $0x80] sm:$0xf]
  %v312 = vld [vmem:[%s4 + $0x84] sm:$0xff]
  %v313 = vld [vmem:[%s4 + $0x8c] sm:$0xf]
  %v314 = vld [vmem:[%s4 + $0x90] sm:$0xff]
  %v315 = vld [vmem:[%s4 + $0x98] sm:$0xf]
  %v316 = vld [vmem:[%s4 + $0x9c] sm:$0xff]
  %v317 = vld [vmem:[%s4 + $0xa4] sm:$0xf]
  %v318 = vld [vmem:[%s4 + $0xa8] sm:$0xff]
  %v319 = vld [vmem:[%s4 + $0xb0] sm:$0xf]
  %v320 = vld [vmem:[%s4 + $0xb4] sm:$0xff]
  %v321 = vld [vmem:[%s4 + $0xbc] sm:$0xf]
  %v354 = vunpack.c.l.b16 %v290
  %v355 = vunpack.c.h.b16 %v290
  %v356 = vunpack.c.l.b16 %v291
  %v357 = vunpack.c.l.b16 %v292
  %v358 = vunpack.c.h.b16 %v292
  %v359 = vunpack.c.l.b16 %v293
  %v360 = vunpack.c.l.b16 %v294
  %v361 = vunpack.c.h.b16 %v294
  %v362 = vunpack.c.l.b16 %v295
  %v363 = vunpack.c.l.b16 %v296
  %v364 = vunpack.c.h.b16 %v296
  %v365 = vunpack.c.l.b16 %v297
  %v366 = vunpack.c.l.b16 %v298
  %v367 = vunpack.c.h.b16 %v298
  %v368 = vunpack.c.l.b16 %v299
  %v369 = vunpack.c.l.b16 %v300
  %v370 = vunpack.c.h.b16 %v300
  %v371 = vunpack.c.l.b16 %v301
  %v372 = vunpack.c.l.b16 %v302
  %v373 = vunpack.c.h.b16 %v302
  %v374 = vunpack.c.l.b16 %v303
  %v375 = vunpack.c.l.b16 %v304
  %v376 = vunpack.c.h.b16 %v304
  %v377 = vunpack.c.l.b16 %v305
  %v378 = vunpack.c.l.b16 %v306
  %v379 = vunpack.c.h.b16 %v306
  %v380 = vunpack.c.l.b16 %v307
  %v381 = vunpack.c.l.b16 %v308
  %v382 = vunpack.c.h.b16 %v308
  %v383 = vunpack.c.l.b16 %v309
  %v384 = vunpack.c.l.b16 %v310
  %v385 = vunpack.c.h.b16 %v310
  %v386 = vunpack.c.l.b16 %v311
  %v387 = vunpack.c.l.b16 %v312
  %v388 = vunpack.c.h.b16 %v312
  %v389 = vunpack.c.l.b16 %v313
  %v390 = vunpack.c.l.b16 %v314
  %v391 = vunpack.c.h.b16 %v314
  %v392 = vunpack.c.l.b16 %v315
  %v393 = vunpack.c.l.b16 %v316
  %v394 = vunpack.c.h.b16 %v316
  %v395 = vunpack.c.l.b16 %v317
  %v396 = vunpack.c.l.b16 %v318
  %v397 = vunpack.c.h.b16 %v318
  %v398 = vunpack.c.l.b16 %v319
  %v399 = vunpack.c.l.b16 %v320
  %v400 = vunpack.c.h.b16 %v320
  %v401 = vunpack.c.l.b16 %v321
  %v402 = vpack.c.b16 %v357, %v354
  %v403 = vpack.c.b16 %v358, %v355
  %v404 = vpack.c.b16 %v359, %v356
  %v405 = vpack.c.b16 %v363, %v360
  %v406 = vpack.c.b16 %v364, %v361
  %v407 = vpack.c.b16 %v365, %v362
  %v408 = vpack.c.b16 %v369, %v366
  %v409 = vpack.c.b16 %v370, %v367
  %v410 = vpack.c.b16 %v371, %v368
  %v411 = vpack.c.b16 %v375, %v372
  %v412 = vpack.c.b16 %v376, %v373
  %v413 = vpack.c.b16 %v377, %v374
  %v414 = vpack.c.b16 %v381, %v378
  %v415 = vpack.c.b16 %v382, %v379
  %v416 = vpack.c.b16 %v383, %v380
  %v417 = vpack.c.b16 %v387, %v384
  %v418 = vpack.c.b16 %v388, %v385
  %v419 = vpack.c.b16 %v389, %v386
  %v420 = vpack.c.b16 %v393, %v390
  %v421 = vpack.c.b16 %v394, %v391
  %v422 = vpack.c.b16 %v395, %v392
  %v423 = vpack.c.b16 %v399, %v396
  %v424 = vpack.c.b16 %v400, %v397
  %v425 = vpack.c.b16 %v401, %v398
  %450 = vmatpush.bf16.msra.mxu0 %v423
  %451 = vmatpush.bf16.msra.mxu0 %v420
  %452 = vmatpush.bf16.msra.mxu0 %v417
  %453 = vmatpush.bf16.msra.mxu0 %v414
  %454 = vmatpush.bf16.msra.mxu0 %v411
  %455 = vmatpush.bf16.msra.mxu0 %v408
  %456 = vmatpush.bf16.msra.mxu0 %v405
  %457 = vmatpush.bf16.msra.mxu0 %v402
  %458 = vmatmul.bf16.gmra.mxu0 %v289
  %v459 = vpop.f32.mrf.mxu0
  %v460 = vadd.f32 0.0, %v459
  %v461 = vpop.f32.mrf.mxu0
  %462 = vdwg.mxu0
  %463 = vmatpush.bf16.msra.mxu0 %v424
  %464 = vmatpush.bf16.msra.mxu0 %v421
  %465 = vmatpush.bf16.msra.mxu0 %v418
  %466 = vmatpush.bf16.msra.mxu0 %v415
  %467 = vmatpush.bf16.msra.mxu0 %v412
  %468 = vmatpush.bf16.msra.mxu0 %v409
  %469 = vmatpush.bf16.msra.mxu0 %v406
  %470 = vmatpush.bf16.msra.mxu0 %v403
  %471 = vmatmul.bf16.gmra.mxu0 %v289
  %v472 = vpop.f32.mrf.mxu0
  %v473 = vadd.f32 0.0, %v472
  %v474 = vpop.f32.mrf.mxu0
  %475 = vdwg.mxu0
  %476 = vmatpush.bf16.msra.mxu0 %v425
  %477 = vmatpush.bf16.msra.mxu0 %v422
  %478 = vmatpush.bf16.msra.mxu0 %v419
  %479 = vmatpush.bf16.msra.mxu0 %v416
  %480 = vmatpush.bf16.msra.mxu0 %v413
  %481 = vmatpush.bf16.msra.mxu0 %v410
  %482 = vmatpush.bf16.msra.mxu0 %v407
  %483 = vmatpush.bf16.msra.mxu0 %v404
  %484 = vmatmul.bf16.gmra.mxu0 %v289
  %v485 = vpop.f32.mrf.mxu0
  %v486 = vadd.f32 0.0, %v485
  %v487 = vpop.f32.mrf.mxu0
  %488 = vdwg.mxu0
  %s489 = scalar_lea.vmem %s1, 4
  %v490 = vld [vmem:[%s489] sm:$0xf]
  %v491 = vunpack.c.l.bf16 %v490
  %v492 = vadd.f32 %v491, %v460
  %v493 = vxor.u32 %v492, 2147483648
  %v494 = vmul.f32 %v493, 1.442695
  %v495 = vpow.pop %v494
  %v496 = vadd.f32 %v495, 1.0
  %v497 = vrcp.pop %v496
  %v498 = vmul.f32 %v496, %v497
  %v499 = vsub.f32 1.0, %v498
  %v500 = vmul.f32 %v497, %v499
  %v501 = vadd.f32 %v497, %v500
  %vm502 = vweird.f32 %v496
  %vm503 = vweird.f32 %v497
  %vm504 = vmor %vm502, %vm503
  %v505 = vsel %vm504, %v497, %v501
  %v506 = vand.u32 2147483647, %v496
  %vm507 = vcmp.eq.f32.partialorder %v506, 8.507059e+37
  %v508 = vand.u32 %v496, 2147483648
  %v509 = vor.u32 1.1754944e-38, %v508
  %v510 = vsel %vm507, %v509, %v505
  %v511 = vmul.f32 1.0, %v510
  %s512 = scalar_lea.vmem %s2, 4
  %v513 = vld [vmem:[%s512] sm:$0xf]
  %v514 = vunpack.c.l.bf16 %v513
  %v515 = vadd.f32 %v514, %v473
  %v516 = vxor.u32 %v515, 2147483648
  %v517 = vmul.f32 %v516, 1.442695
  %v518 = vpow.pop %v517
  %v519 = vadd.f32 %v518, 1.0
  %v520 = vrcp.pop %v519
  %v521 = vmul.f32 %v519, %v520
  %v522 = vsub.f32 1.0, %v521
  %v523 = vmul.f32 %v520, %v522
  %v524 = vadd.f32 %v520, %v523
  %vm525 = vweird.f32 %v519
  %vm526 = vweird.f32 %v520
  %vm527 = vmor %vm525, %vm526
  %v528 = vsel %vm527, %v520, %v524
  %v529 = vand.u32 2147483647, %v519
  %vm530 = vcmp.eq.f32.partialorder %v529, 8.507059e+37
  %v531 = vand.u32 %v519, 2147483648
  %v532 = vor.u32 1.1754944e-38, %v531
  %v533 = vsel %vm530, %v532, %v528
  %v534 = vmul.f32 1.0, %v533
  %s535 = scalar_lea.vmem %s3, 4
  %v536 = vld [vmem:[%s535] sm:$0xf]
  %v537 = vunpack.c.l.bf16 %v536
  %v538 = vadd.f32 %v486, %v31
  %v539 = vmul.f32 %v511, %v538
  %v540 = vadd.f32 %v537, %v539
  %v541 = vtanh.pop %v540
  %v542 = vsub.f32 1.0, %v534
  %v543 = vmul.f32 %v542, %v541
  %v544 = vmul.f32 %v534, %v287
  %v545 = vadd.f32 %v543, %v544
  %s546 = scalar_lea.vmem %s6, 8
  %547 = vst [vmem:[%s546] sm:$0xff] %v545
  %v548 = vpack.c.bf16 %v545, %v545
  %v549 = vld [vmem:[%s4] sm:$0xff]
  %v550 = vld [vmem:[%s4 + $0x8] sm:$0xf]
  %v551 = vld [vmem:[%s4 + $0xc] sm:$0xff]
  %v552 = vld [vmem:[%s4 + $0x14] sm:$0xf]
  %v553 = vld [vmem:[%s4 + $0x18] sm:$0xff]
  %v554 = vld [vmem:[%s4 + $0x20] sm:$0xf]
  %v555 = vld [vmem:[%s4 + $0x24] sm:$0xff]
  %v556 = vld [vmem:[%s4 + $0x2c] sm:$0xf]
  %v557 = vld [vmem:[%s4 + $0x30] sm:$0xff]
  %v558 = vld [vmem:[%s4 + $0x38] sm:$0xf]
  %v559 = vld [vmem:[%s4 + $0x3c] sm:$0xff]
  %v560 = vld [vmem:[%s4 + $0x44] sm:$0xf]
  %v561 = vld [vmem:[%s4 + $0x48] sm:$0xff]
  %v562 = vld [vmem:[%s4 + $0x50] sm:$0xf]
  %v563 = vld [vmem:[%s4 + $0x54] sm:$0xff]
  %v564 = vld [vmem:[%s4 + $0x5c] sm:$0xf]
  %v565 = vld [vmem:[%s4 + $0x60] sm:$0xff]
  %v566 = vld [vmem:[%s4 + $0x68] sm:$0xf]
  %v567 = vld [vmem:[%s4 + $0x6c] sm:$0xff]
  %v568 = vld [vmem:[%s4 + $0x74] sm:$0xf]
  %v569 = vld [vmem:[%s4 + $0x78] sm:$0xff]
  %v570 = vld [vmem:[%s4 + $0x80] sm:$0xf]
  %v571 = vld [vmem:[%s4 + $0x84] sm:$0xff]
  %v572 = vld [vmem:[%s4 + $0x8c] sm:$0xf]
  %v573 = vld [vmem:[%s4 + $0x90] sm:$0xff]
  %v574 = vld [vmem:[%s4 + $0x98] sm:$0xf]
  %v575 = vld [vmem:[%s4 + $0x9c] sm:$0xff]
  %v576 = vld [vmem:[%s4 + $0xa4] sm:$0xf]
  %v577 = vld [vmem:[%s4 + $0xa8] sm:$0xff]
  %v578 = vld [vmem:[%s4 + $0xb0] sm:$0xf]
  %v579 = vld [vmem:[%s4 + $0xb4] sm:$0xff]
  %v580 = vld [vmem:[%s4 + $0xbc] sm:$0xf]
  %v613 = vunpack.c.l.b16 %v549
  %v614 = vunpack.c.h.b16 %v549
  %v615 = vunpack.c.l.b16 %v550
  %v616 = vunpack.c.l.b16 %v551
  %v617 = vunpack.c.h.b16 %v551
  %v618 = vunpack.c.l.b16 %v552
  %v619 = vunpack.c.l.b16 %v553
  %v620 = vunpack.c.h.b16 %v553
  %v621 = vunpack.c.l.b16 %v554
  %v622 = vunpack.c.l.b16 %v555
  %v623 = vunpack.c.h.b16 %v555
  %v624 = vunpack.c.l.b16 %v556
  %v625 = vunpack.c.l.b16 %v557
  %v626 = vunpack.c.h.b16 %v557
  %v627 = vunpack.c.l.b16 %v558
  %v628 = vunpack.c.l.b16 %v559
  %v629 = vunpack.c.h.b16 %v559
  %v630 = vunpack.c.l.b16 %v560
  %v631 = vunpack.c.l.b16 %v561
  %v632 = vunpack.c.h.b16 %v561
  %v633 = vunpack.c.l.b16 %v562
  %v634 = vunpack.c.l.b16 %v563
  %v635 = vunpack.c.h.b16 %v563
  %v636 = vunpack.c.l.b16 %v564
  %v637 = vunpack.c.l.b16 %v565
  %v638 = vunpack.c.h.b16 %v565
  %v639 = vunpack.c.l.b16 %v566
  %v640 = vunpack.c.l.b16 %v567
  %v641 = vunpack.c.h.b16 %v567
  %v642 = vunpack.c.l.b16 %v568
  %v643 = vunpack.c.l.b16 %v569
  %v644 = vunpack.c.h.b16 %v569
  %v645 = vunpack.c.l.b16 %v570
  %v646 = vunpack.c.l.b16 %v571
  %v647 = vunpack.c.h.b16 %v571
  %v648 = vunpack.c.l.b16 %v572
  %v649 = vunpack.c.l.b16 %v573
  %v650 = vunpack.c.h.b16 %v573
  %v651 = vunpack.c.l.b16 %v574
  %v652 = vunpack.c.l.b16 %v575
  %v653 = vunpack.c.h.b16 %v575
  %v654 = vunpack.c.l.b16 %v576
  %v655 = vunpack.c.l.b16 %v577
  %v656 = vunpack.c.h.b16 %v577
  %v657 = vunpack.c.l.b16 %v578
  %v658 = vunpack.c.l.b16 %v579
  %v659 = vunpack.c.h.b16 %v579
  %v660 = vunpack.c.l.b16 %v580
  %v661 = vpack.c.b16 %v616, %v613
  %v662 = vpack.c.b16 %v617, %v614
  %v663 = vpack.c.b16 %v618, %v615
  %v664 = vpack.c.b16 %v622, %v619
  %v665 = vpack.c.b16 %v623, %v620
  %v666 = vpack.c.b16 %v624, %v621
  %v667 = vpack.c.b16 %v628, %v625
  %v668 = vpack.c.b16 %v629, %v626
  %v669 = vpack.c.b16 %v630, %v627
  %v670 = vpack.c.b16 %v634, %v631
  %v671 = vpack.c.b16 %v635, %v632
  %v672 = vpack.c.b16 %v636, %v633
  %v673 = vpack.c.b16 %v640, %v637
  %v674 = vpack.c.b16 %v641, %v638
  %v675 = vpack.c.b16 %v642, %v639
  %v676 = vpack.c.b16 %v646, %v643
  %v677 = vpack.c.b16 %v647, %v644
  %v678 = vpack.c.b16 %v648, %v645
  %v679 = vpack.c.b16 %v652, %v649
  %v680 = vpack.c.b16 %v653, %v650
  %v681 = vpack.c.b16 %v654, %v651
  %v682 = vpack.c.b16 %v658, %v655
  %v683 = vpack.c.b16 %v659, %v656
  %v684 = vpack.c.b16 %v660, %v657
  %709 = vmatpush.bf16.msra.mxu0 %v682
  %710 = vmatpush.bf16.msra.mxu0 %v679
  %711 = vmatpush.bf16.msra.mxu0 %v676
  %712 = vmatpush.bf16.msra.mxu0 %v673
  %713 = vmatpush.bf16.msra.mxu0 %v670
  %714 = vmatpush.bf16.msra.mxu0 %v667
  %715 = vmatpush.bf16.msra.mxu0 %v664
  %716 = vmatpush.bf16.msra.mxu0 %v661
  %717 = vmatmul.bf16.gmra.mxu0 %v548
  %v718 = vpop.f32.mrf.mxu0
  %v719 = vadd.f32 0.0, %v718
  %v720 = vpop.f32.mrf.mxu0
  %721 = vdwg.mxu0
  %722 = vmatpush.bf16.msra.mxu0 %v683
  %723 = vmatpush.bf16.msra.mxu0 %v680
  %724 = vmatpush.bf16.msra.mxu0 %v677
  %725 = vmatpush.bf16.msra.mxu0 %v674
  %726 = vmatpush.bf16.msra.mxu0 %v671
  %727 = vmatpush.bf16.msra.mxu0 %v668
  %728 = vmatpush.bf16.msra.mxu0 %v665
  %729 = vmatpush.bf16.msra.mxu0 %v662
  %730 = vmatmul.bf16.gmra.mxu0 %v548
  %v731 = vpop.f32.mrf.mxu0
  %v732 = vadd.f32 0.0, %v731
  %v733 = vpop.f32.mrf.mxu0
  %734 = vdwg.mxu0
  %735 = vmatpush.bf16.msra.mxu0 %v684
  %736 = vmatpush.bf16.msra.mxu0 %v681
  %737 = vmatpush.bf16.msra.mxu0 %v678
  %738 = vmatpush.bf16.msra.mxu0 %v675
  %739 = vmatpush.bf16.msra.mxu0 %v672
  %740 = vmatpush.bf16.msra.mxu0 %v669
  %741 = vmatpush.bf16.msra.mxu0 %v666
  %742 = vmatpush.bf16.msra.mxu0 %v663
  %743 = vmatmul.bf16.gmra.mxu0 %v548
  %v744 = vpop.f32.mrf.mxu0
  %v745 = vadd.f32 0.0, %v744
  %v746 = vpop.f32.mrf.mxu0
  %747 = vdwg.mxu0
  %s748 = scalar_lea.vmem %s1, 8
  %v749 = vld [vmem:[%s748] sm:$0xf]
  %v750 = vunpack.c.l.bf16 %v749
  %v751 = vadd.f32 %v750, %v719
  %v752 = vxor.u32 %v751, 2147483648
  %v753 = vmul.f32 %v752, 1.442695
  %v754 = vpow.pop %v753
  %v755 = vadd.f32 %v754, 1.0
  %v756 = vrcp.pop %v755
  %v757 = vmul.f32 %v755, %v756
  %v758 = vsub.f32 1.0, %v757
  %v759 = vmul.f32 %v756, %v758
  %v760 = vadd.f32 %v756, %v759
  %vm761 = vweird.f32 %v755
  %vm762 = vweird.f32 %v756
  %vm763 = vmor %vm761, %vm762
  %v764 = vsel %vm763, %v756, %v760
  %v765 = vand.u32 2147483647, %v755
  %vm766 = vcmp.eq.f32.partialorder %v765, 8.507059e+37
  %v767 = vand.u32 %v755, 2147483648
  %v768 = vor.u32 1.1754944e-38, %v767
  %v769 = vsel %vm766, %v768, %v764
  %v770 = vmul.f32 1.0, %v769
  %s771 = scalar_lea.vmem %s2, 8
  %v772 = vld [vmem:[%s771] sm:$0xf]
  %v773 = vunpack.c.l.bf16 %v772
  %v774 = vadd.f32 %v773, %v732
  %v775 = vxor.u32 %v774, 2147483648
  %v776 = vmul.f32 %v775, 1.442695
  %v777 = vpow.pop %v776
  %v778 = vadd.f32 %v777, 1.0
  %v779 = vrcp.pop %v778
  %v780 = vmul.f32 %v778, %v779
  %v781 = vsub.f32 1.0, %v780
  %v782 = vmul.f32 %v779, %v781
  %v783 = vadd.f32 %v779, %v782
  %vm784 = vweird.f32 %v778
  %vm785 = vweird.f32 %v779
  %vm786 = vmor %vm784, %vm785
  %v787 = vsel %vm786, %v779, %v783
  %v788 = vand.u32 2147483647, %v778
  %vm789 = vcmp.eq.f32.partialorder %v788, 8.507059e+37
  %v790 = vand.u32 %v778, 2147483648
  %v791 = vor.u32 1.1754944e-38, %v790
  %v792 = vsel %vm789, %v791, %v787
  %v793 = vmul.f32 1.0, %v792
  %s794 = scalar_lea.vmem %s3, 8
  %v795 = vld [vmem:[%s794] sm:$0xf]
  %v796 = vunpack.c.l.bf16 %v795
  %v797 = vadd.f32 %v745, %v31
  %v798 = vmul.f32 %v770, %v797
  %v799 = vadd.f32 %v796, %v798
  %v800 = vtanh.pop %v799
  %v801 = vsub.f32 1.0, %v793
  %v802 = vmul.f32 %v801, %v800
  %v803 = vmul.f32 %v793, %v545
  %v804 = vadd.f32 %v802, %v803
  %s805 = scalar_lea.vmem %s6, 16
  %806 = vst [vmem:[%s805] sm:$0xff] %v804
  %v807 = vpack.c.bf16 %v804, %v804
  %v808 = vld [vmem:[%s4] sm:$0xff]
  %v809 = vld [vmem:[%s4 + $0x8] sm:$0xf]
  %v810 = vld [vmem:[%s4 + $0xc] sm:$0xff]
  %v811 = vld [vmem:[%s4 + $0x14] sm:$0xf]
  %v812 = vld [vmem:[%s4 + $0x18] sm:$0xff]
  %v813 = vld [vmem:[%s4 + $0x20] sm:$0xf]
  %v814 = vld [vmem:[%s4 + $0x24] sm:$0xff]
  %v815 = vld [vmem:[%s4 + $0x2c] sm:$0xf]
  %v816 = vld [vmem:[%s4 + $0x30] sm:$0xff]
  %v817 = vld [vmem:[%s4 + $0x38] sm:$0xf]
  %v818 = vld [vmem:[%s4 + $0x3c] sm:$0xff]
  %v819 = vld [vmem:[%s4 + $0x44] sm:$0xf]
  %v820 = vld [vmem:[%s4 + $0x48] sm:$0xff]
  %v821 = vld [vmem:[%s4 + $0x50] sm:$0xf]
  %v822 = vld [vmem:[%s4 + $0x54] sm:$0xff]
  %v823 = vld [vmem:[%s4 + $0x5c] sm:$0xf]
  %v824 = vld [vmem:[%s4 + $0x60] sm:$0xff]
  %v825 = vld [vmem:[%s4 + $0x68] sm:$0xf]
  %v826 = vld [vmem:[%s4 + $0x6c] sm:$0xff]
  %v827 = vld [vmem:[%s4 + $0x74] sm:$0xf]
  %v828 = vld [vmem:[%s4 + $0x78] sm:$0xff]
  %v829 = vld [vmem:[%s4 + $0x80] sm:$0xf]
  %v830 = vld [vmem:[%s4 + $0x84] sm:$0xff]
  %v831 = vld [vmem:[%s4 + $0x8c] sm:$0xf]
  %v832 = vld [vmem:[%s4 + $0x90] sm:$0xff]
  %v833 = vld [vmem:[%s4 + $0x98] sm:$0xf]
  %v834 = vld [vmem:[%s4 + $0x9c] sm:$0xff]
  %v835 = vld [vmem:[%s4 + $0xa4] sm:$0xf]
  %v836 = vld [vmem:[%s4 + $0xa8] sm:$0xff]
  %v837 = vld [vmem:[%s4 + $0xb0] sm:$0xf]
  %v838 = vld [vmem:[%s4 + $0xb4] sm:$0xff]
  %v839 = vld [vmem:[%s4 + $0xbc] sm:$0xf]
  %v872 = vunpack.c.l.b16 %v808
  %v873 = vunpack.c.h.b16 %v808
  %v874 = vunpack.c.l.b16 %v809
  %v875 = vunpack.c.l.b16 %v810
  %v876 = vunpack.c.h.b16 %v810
  %v877 = vunpack.c.l.b16 %v811
  %v878 = vunpack.c.l.b16 %v812
  %v879 = vunpack.c.h.b16 %v812
  %v880 = vunpack.c.l.b16 %v813
  %v881 = vunpack.c.l.b16 %v814
  %v882 = vunpack.c.h.b16 %v814
  %v883 = vunpack.c.l.b16 %v815
  %v884 = vunpack.c.l.b16 %v816
  %v885 = vunpack.c.h.b16 %v816
  %v886 = vunpack.c.l.b16 %v817
  %v887 = vunpack.c.l.b16 %v818
  %v888 = vunpack.c.h.b16 %v818
  %v889 = vunpack.c.l.b16 %v819
  %v890 = vunpack.c.l.b16 %v820
  %v891 = vunpack.c.h.b16 %v820
  %v892 = vunpack.c.l.b16 %v821
  %v893 = vunpack.c.l.b16 %v822
  %v894 = vunpack.c.h.b16 %v822
  %v895 = vunpack.c.l.b16 %v823
  %v896 = vunpack.c.l.b16 %v824
  %v897 = vunpack.c.h.b16 %v824
  %v898 = vunpack.c.l.b16 %v825
  %v899 = vunpack.c.l.b16 %v826
  %v900 = vunpack.c.h.b16 %v826
  %v901 = vunpack.c.l.b16 %v827
  %v902 = vunpack.c.l.b16 %v828
  %v903 = vunpack.c.h.b16 %v828
  %v904 = vunpack.c.l.b16 %v829
  %v905 = vunpack.c.l.b16 %v830
  %v906 = vunpack.c.h.b16 %v830
  %v907 = vunpack.c.l.b16 %v831
  %v908 = vunpack.c.l.b16 %v832
  %v909 = vunpack.c.h.b16 %v832
  %v910 = vunpack.c.l.b16 %v833
  %v911 = vunpack.c.l.b16 %v834
  %v912 = vunpack.c.h.b16 %v834
  %v913 = vunpack.c.l.b16 %v835
  %v914 = vunpack.c.l.b16 %v836
  %v915 = vunpack.c.h.b16 %v836
  %v916 = vunpack.c.l.b16 %v837
  %v917 = vunpack.c.l.b16 %v838
  %v918 = vunpack.c.h.b16 %v838
  %v919 = vunpack.c.l.b16 %v839
  %v920 = vpack.c.b16 %v875, %v872
  %v921 = vpack.c.b16 %v876, %v873
  %v922 = vpack.c.b16 %v877, %v874
  %v923 = vpack.c.b16 %v881, %v878
  %v924 = vpack.c.b16 %v882, %v879
  %v925 = vpack.c.b16 %v883, %v880
  %v926 = vpack.c.b16 %v887, %v884
  %v927 = vpack.c.b16 %v888, %v885
  %v928 = vpack.c.b16 %v889, %v886
  %v929 = vpack.c.b16 %v893, %v890
  %v930 = vpack.c.b16 %v894, %v891
  %v931 = vpack.c.b16 %v895, %v892
  %v932 = vpack.c.b16 %v899, %v896
  %v933 = vpack.c.b16 %v900, %v897
  %v934 = vpack.c.b16 %v901, %v898
  %v935 = vpack.c.b16 %v905, %v902
  %v936 = vpack.c.b16 %v906, %v903
  %v937 = vpack.c.b16 %v907, %v904
  %v938 = vpack.c.b16 %v911, %v908
  %v939 = vpack.c.b16 %v912, %v909
  %v940 = vpack.c.b16 %v913, %v910
  %v941 = vpack.c.b16 %v917, %v914
  %v942 = vpack.c.b16 %v918, %v915
  %v943 = vpack.c.b16 %v919, %v916
  %968 = vmatpush.bf16.msra.mxu0 %v941
  %969 = vmatpush.bf16.msra.mxu0 %v938
  %970 = vmatpush.bf16.msra.mxu0 %v935
  %971 = vmatpush.bf16.msra.mxu0 %v932
  %972 = vmatpush.bf16.msra.mxu0 %v929
  %973 = vmatpush.bf16.msra.mxu0 %v926
  %974 = vmatpush.bf16.msra.mxu0 %v923
  %975 = vmatpush.bf16.msra.mxu0 %v920
  %976 = vmatmul.bf16.gmra.mxu0 %v807
  %v977 = vpop.f32.mrf.mxu0
  %v978 = vadd.f32 0.0, %v977
  %v979 = vpop.f32.mrf.mxu0
  %980 = vdwg.mxu0
  %981 = vmatpush.bf16.msra.mxu0 %v942
  %982 = vmatpush.bf16.msra.mxu0 %v939
  %983 = vmatpush.bf16.msra.mxu0 %v936
  %984 = vmatpush.bf16.msra.mxu0 %v933
  %985 = vmatpush.bf16.msra.mxu0 %v930
  %986 = vmatpush.bf16.msra.mxu0 %v927
  %987 = vmatpush.bf16.msra.mxu0 %v924
  %988 = vmatpush.bf16.msra.mxu0 %v921
  %989 = vmatmul.bf16.gmra.mxu0 %v807
  %v990 = vpop.f32.mrf.mxu0
  %v991 = vadd.f32 0.0, %v990
  %v992 = vpop.f32.mrf.mxu0
  %993 = vdwg.mxu0
  %994 = vmatpush.bf16.msra.mxu0 %v943
  %995 = vmatpush.bf16.msra.mxu0 %v940
  %996 = vmatpush.bf16.msra.mxu0 %v937
  %997 = vmatpush.bf16.msra.mxu0 %v934
  %998 = vmatpush.bf16.msra.mxu0 %v931
  %999 = vmatpush.bf16.msra.mxu0 %v928
  %1000 = vmatpush.bf16.msra.mxu0 %v925
  %1001 = vmatpush.bf16.msra.mxu0 %v922
  %1002 = vmatmul.bf16.gmra.mxu0 %v807
  %v1003 = vpop.f32.mrf.mxu0
  %v1004 = vadd.f32 0.0, %v1003
  %v1005 = vpop.f32.mrf.mxu0
  %1006 = vdwg.mxu0
  %s1007 = scalar_lea.vmem %s1, 12
  %v1008 = vld [vmem:[%s1007] sm:$0xf]
  %v1009 = vunpack.c.l.bf16 %v1008
  %v1010 = vadd.f32 %v1009, %v978
  %v1011 = vxor.u32 %v1010, 2147483648
  %v1012 = vmul.f32 %v1011, 1.442695
  %v1013 = vpow.pop %v1012
  %v1014 = vadd.f32 %v1013, 1.0
  %v1015 = vrcp.pop %v1014
  %v1016 = vmul.f32 %v1014, %v1015
  %v1017 = vsub.f32 1.0, %v1016
  %v1018 = vmul.f32 %v1015, %v1017
  %v1019 = vadd.f32 %v1015, %v1018
  %vm1020 = vweird.f32 %v1014
  %vm1021 = vweird.f32 %v1015
  %vm1022 = vmor %vm1020, %vm1021
  %v1023 = vsel %vm1022, %v1015, %v1019
  %v1024 = vand.u32 2147483647, %v1014
  %vm1025 = vcmp.eq.f32.partialorder %v1024, 8.507059e+37
  %v1026 = vand.u32 %v1014, 2147483648
  %v1027 = vor.u32 1.1754944e-38, %v1026
  %v1028 = vsel %vm1025, %v1027, %v1023
  %v1029 = vmul.f32 1.0, %v1028
  %s1030 = scalar_lea.vmem %s2, 12
  %v1031 = vld [vmem:[%s1030] sm:$0xf]
  %v1032 = vunpack.c.l.bf16 %v1031
  %v1033 = vadd.f32 %v1032, %v991
  %v1034 = vxor.u32 %v1033, 2147483648
  %v1035 = vmul.f32 %v1034, 1.442695
  %v1036 = vpow.pop %v1035
  %v1037 = vadd.f32 %v1036, 1.0
  %v1038 = vrcp.pop %v1037
  %v1039 = vmul.f32 %v1037, %v1038
  %v1040 = vsub.f32 1.0, %v1039
  %v1041 = vmul.f32 %v1038, %v1040
  %v1042 = vadd.f32 %v1038, %v1041
  %vm1043 = vweird.f32 %v1037
  %vm1044 = vweird.f32 %v1038
  %vm1045 = vmor %vm1043, %vm1044
  %v1046 = vsel %vm1045, %v1038, %v1042
  %v1047 = vand.u32 2147483647, %v1037
  %vm1048 = vcmp.eq.f32.partialorder %v1047, 8.507059e+37
  %v1049 = vand.u32 %v1037, 2147483648
  %v1050 = vor.u32 1.1754944e-38, %v1049
  %v1051 = vsel %vm1048, %v1050, %v1046
  %v1052 = vmul.f32 1.0, %v1051
  %s1053 = scalar_lea.vmem %s3, 12
  %v1054 = vld [vmem:[%s1053] sm:$0xf]
  %v1055 = vunpack.c.l.bf16 %v1054
  %v1056 = vadd.f32 %v1004, %v31
  %v1057 = vmul.f32 %v1029, %v1056
  %v1058 = vadd.f32 %v1055, %v1057
  %v1059 = vtanh.pop %v1058
  %v1060 = vsub.f32 1.0, %v1052
  %v1061 = vmul.f32 %v1060, %v1059
  %v1062 = vmul.f32 %v1052, %v804
  %v1063 = vadd.f32 %v1061, %v1062
  %s1064 = scalar_lea.vmem %s6, 24
  %1065 = vst [vmem:[%s1064] sm:$0xff] %v1063
  %v1066 = vpack.c.bf16 %v1063, %v1063
  %v1067 = vld [vmem:[%s4] sm:$0xff]
  %v1068 = vld [vmem:[%s4 + $0x8] sm:$0xf]
  %v1069 = vld [vmem:[%s4 + $0xc] sm:$0xff]
  %v1070 = vld [vmem:[%s4 + $0x14] sm:$0xf]
  %v1071 = vld [vmem:[%s4 + $0x18] sm:$0xff]
  %v1072 = vld [vmem:[%s4 + $0x20] sm:$0xf]
  %v1073 = vld [vmem:[%s4 + $0x24] sm:$0xff]
  %v1074 = vld [vmem:[%s4 + $0x2c] sm:$0xf]
  %v1075 = vld [vmem:[%s4 + $0x30] sm:$0xff]
  %v1076 = vld [vmem:[%s4 + $0x38] sm:$0xf]
  %v1077 = vld [vmem:[%s4 + $0x3c] sm:$0xff]
  %v1078 = vld [vmem:[%s4 + $0x44] sm:$0xf]
  %v1079 = vld [vmem:[%s4 + $0x48] sm:$0xff]
  %v1080 = vld [vmem:[%s4 + $0x50] sm:$0xf]
  %v1081 = vld [vmem:[%s4 + $0x54] sm:$0xff]
  %v1082 = vld [vmem:[%s4 + $0x5c] sm:$0xf]
  %v1083 = vld [vmem:[%s4 + $0x60] sm:$0xff]
  %v1084 = vld [vmem:[%s4 + $0x68] sm:$0xf]
  %v1085 = vld [vmem:[%s4 + $0x6c] sm:$0xff]
  %v1086 = vld [vmem:[%s4 + $0x74] sm:$0xf]
  %v1087 = vld [vmem:[%s4 + $0x78] sm:$0xff]
  %v1088 = vld [vmem:[%s4 + $0x80] sm:$0xf]
  %v1089 = vld [vmem:[%s4 + $0x84] sm:$0xff]
  %v1090 = vld [vmem:[%s4 + $0x8c] sm:$0xf]
  %v1091 = vld [vmem:[%s4 + $0x90] sm:$0xff]
  %v1092 = vld [vmem:[%s4 + $0x98] sm:$0xf]
  %v1093 = vld [vmem:[%s4 + $0x9c] sm:$0xff]
  %v1094 = vld [vmem:[%s4 + $0xa4] sm:$0xf]
  %v1095 = vld [vmem:[%s4 + $0xa8] sm:$0xff]
  %v1096 = vld [vmem:[%s4 + $0xb0] sm:$0xf]
  %v1097 = vld [vmem:[%s4 + $0xb4] sm:$0xff]
  %v1098 = vld [vmem:[%s4 + $0xbc] sm:$0xf]
  %v1131 = vunpack.c.l.b16 %v1067
  %v1132 = vunpack.c.h.b16 %v1067
  %v1133 = vunpack.c.l.b16 %v1068
  %v1134 = vunpack.c.l.b16 %v1069
  %v1135 = vunpack.c.h.b16 %v1069
  %v1136 = vunpack.c.l.b16 %v1070
  %v1137 = vunpack.c.l.b16 %v1071
  %v1138 = vunpack.c.h.b16 %v1071
  %v1139 = vunpack.c.l.b16 %v1072
  %v1140 = vunpack.c.l.b16 %v1073
  %v1141 = vunpack.c.h.b16 %v1073
  %v1142 = vunpack.c.l.b16 %v1074
  %v1143 = vunpack.c.l.b16 %v1075
  %v1144 = vunpack.c.h.b16 %v1075
  %v1145 = vunpack.c.l.b16 %v1076
  %v1146 = vunpack.c.l.b16 %v1077
  %v1147 = vunpack.c.h.b16 %v1077
  %v1148 = vunpack.c.l.b16 %v1078
  %v1149 = vunpack.c.l.b16 %v1079
  %v1150 = vunpack.c.h.b16 %v1079
  %v1151 = vunpack.c.l.b16 %v1080
  %v1152 = vunpack.c.l.b16 %v1081
  %v1153 = vunpack.c.h.b16 %v1081
  %v1154 = vunpack.c.l.b16 %v1082
  %v1155 = vunpack.c.l.b16 %v1083
  %v1156 = vunpack.c.h.b16 %v1083
  %v1157 = vunpack.c.l.b16 %v1084
  %v1158 = vunpack.c.l.b16 %v1085
  %v1159 = vunpack.c.h.b16 %v1085
  %v1160 = vunpack.c.l.b16 %v1086
  %v1161 = vunpack.c.l.b16 %v1087
  %v1162 = vunpack.c.h.b16 %v1087
  %v1163 = vunpack.c.l.b16 %v1088
  %v1164 = vunpack.c.l.b16 %v1089
  %v1165 = vunpack.c.h.b16 %v1089
  %v1166 = vunpack.c.l.b16 %v1090
  %v1167 = vunpack.c.l.b16 %v1091
  %v1168 = vunpack.c.h.b16 %v1091
  %v1169 = vunpack.c.l.b16 %v1092
  %v1170 = vunpack.c.l.b16 %v1093
  %v1171 = vunpack.c.h.b16 %v1093
  %v1172 = vunpack.c.l.b16 %v1094
  %v1173 = vunpack.c.l.b16 %v1095
  %v1174 = vunpack.c.h.b16 %v1095
  %v1175 = vunpack.c.l.b16 %v1096
  %v1176 = vunpack.c.l.b16 %v1097
  %v1177 = vunpack.c.h.b16 %v1097
  %v1178 = vunpack.c.l.b16 %v1098
  %v1179 = vpack.c.b16 %v1134, %v1131
  %v1180 = vpack.c.b16 %v1135, %v1132
  %v1181 = vpack.c.b16 %v1136, %v1133
  %v1182 = vpack.c.b16 %v1140, %v1137
  %v1183 = vpack.c.b16 %v1141, %v1138
  %v1184 = vpack.c.b16 %v1142, %v1139
  %v1185 = vpack.c.b16 %v1146, %v1143
  %v1186 = vpack.c.b16 %v1147, %v1144
  %v1187 = vpack.c.b16 %v1148, %v1145
  %v1188 = vpack.c.b16 %v1152, %v1149
  %v1189 = vpack.c.b16 %v1153, %v1150
  %v1190 = vpack.c.b16 %v1154, %v1151
  %v1191 = vpack.c.b16 %v1158, %v1155
  %v1192 = vpack.c.b16 %v1159, %v1156
  %v1193 = vpack.c.b16 %v1160, %v1157
  %v1194 = vpack.c.b16 %v1164, %v1161
  %v1195 = vpack.c.b16 %v1165, %v1162
  %v1196 = vpack.c.b16 %v1166, %v1163
  %v1197 = vpack.c.b16 %v1170, %v1167
  %v1198 = vpack.c.b16 %v1171, %v1168
  %v1199 = vpack.c.b16 %v1172, %v1169
  %v1200 = vpack.c.b16 %v1176, %v1173
  %v1201 = vpack.c.b16 %v1177, %v1174
  %v1202 = vpack.c.b16 %v1178, %v1175
  %1227 = vmatpush.bf16.msra.mxu0 %v1200
  %1228 = vmatpush.bf16.msra.mxu0 %v1197
  %1229 = vmatpush.bf16.msra.mxu0 %v1194
  %1230 = vmatpush.bf16.msra.mxu0 %v1191
  %1231 = vmatpush.bf16.msra.mxu0 %v1188
  %1232 = vmatpush.bf16.msra.mxu0 %v1185
  %1233 = vmatpush.bf16.msra.mxu0 %v1182
  %1234 = vmatpush.bf16.msra.mxu0 %v1179
  %1235 = vmatmul.bf16.gmra.mxu0 %v1066
  %v1236 = vpop.f32.mrf.mxu0
  %v1237 = vadd.f32 0.0, %v1236
  %v1238 = vpop.f32.mrf.mxu0
  %1239 = vdwg.mxu0
  %1240 = vmatpush.bf16.msra.mxu0 %v1201
  %1241 = vmatpush.bf16.msra.mxu0 %v1198
  %1242 = vmatpush.bf16.msra.mxu0 %v1195
  %1243 = vmatpush.bf16.msra.mxu0 %v1192
  %1244 = vmatpush.bf16.msra.mxu0 %v1189
  %1245 = vmatpush.bf16.msra.mxu0 %v1186
  %1246 = vmatpush.bf16.msra.mxu0 %v1183
  %1247 = vmatpush.bf16.msra.mxu0 %v1180
  %1248 = vmatmul.bf16.gmra.mxu0 %v1066
  %v1249 = vpop.f32.mrf.mxu0
  %v1250 = vadd.f32 0.0, %v1249
  %v1251 = vpop.f32.mrf.mxu0
  %1252 = vdwg.mxu0
  %1253 = vmatpush.bf16.msra.mxu0 %v1202
  %1254 = vmatpush.bf16.msra.mxu0 %v1199
  %1255 = vmatpush.bf16.msra.mxu0 %v1196
  %1256 = vmatpush.bf16.msra.mxu0 %v1193
  %1257 = vmatpush.bf16.msra.mxu0 %v1190
  %1258 = vmatpush.bf16.msra.mxu0 %v1187
  %1259 = vmatpush.bf16.msra.mxu0 %v1184
  %1260 = vmatpush.bf16.msra.mxu0 %v1181
  %1261 = vmatmul.bf16.gmra.mxu0 %v1066
  %v1262 = vpop.f32.mrf.mxu0
  %v1263 = vadd.f32 0.0, %v1262
  %v1264 = vpop.f32.mrf.mxu0
  %1265 = vdwg.mxu0
  %s1266 = scalar_lea.vmem %s1, 16
  %v1267 = vld [vmem:[%s1266] sm:$0xf]
  %v1268 = vunpack.c.l.bf16 %v1267
  %v1269 = vadd.f32 %v1268, %v1237
  %v1270 = vxor.u32 %v1269, 2147483648
  %v1271 = vmul.f32 %v1270, 1.442695
  %v1272 = vpow.pop %v1271
  %v1273 = vadd.f32 %v1272, 1.0
  %v1274 = vrcp.pop %v1273
  %v1275 = vmul.f32 %v1273, %v1274
  %v1276 = vsub.f32 1.0, %v1275
  %v1277 = vmul.f32 %v1274, %v1276
  %v1278 = vadd.f32 %v1274, %v1277
  %vm1279 = vweird.f32 %v1273
  %vm1280 = vweird.f32 %v1274
  %vm1281 = vmor %vm1279, %vm1280
  %v1282 = vsel %vm1281, %v1274, %v1278
  %v1283 = vand.u32 2147483647, %v1273
  %vm1284 = vcmp.eq.f32.partialorder %v1283, 8.507059e+37
  %v1285 = vand.u32 %v1273, 2147483648
  %v1286 = vor.u32 1.1754944e-38, %v1285
  %v1287 = vsel %vm1284, %v1286, %v1282
  %v1288 = vmul.f32 1.0, %v1287
  %s1289 = scalar_lea.vmem %s2, 16
  %v1290 = vld [vmem:[%s1289] sm:$0xf]
  %v1291 = vunpack.c.l.bf16 %v1290
  %v1292 = vadd.f32 %v1291, %v1250
  %v1293 = vxor.u32 %v1292, 2147483648
  %v1294 = vmul.f32 %v1293, 1.442695
  %v1295 = vpow.pop %v1294
  %v1296 = vadd.f32 %v1295, 1.0
  %v1297 = vrcp.pop %v1296
  %v1298 = vmul.f32 %v1296, %v1297
  %v1299 = vsub.f32 1.0, %v1298
  %v1300 = vmul.f32 %v1297, %v1299
  %v1301 = vadd.f32 %v1297, %v1300
  %vm1302 = vweird.f32 %v1296
  %vm1303 = vweird.f32 %v1297
  %vm1304 = vmor %vm1302, %vm1303
  %v1305 = vsel %vm1304, %v1297, %v1301
  %v1306 = vand.u32 2147483647, %v1296
  %vm1307 = vcmp.eq.f32.partialorder %v1306, 8.507059e+37
  %v1308 = vand.u32 %v1296, 2147483648
  %v1309 = vor.u32 1.1754944e-38, %v1308
  %v1310 = vsel %vm1307, %v1309, %v1305
  %v1311 = vmul.f32 1.0, %v1310
  %s1312 = scalar_lea.vmem %s3, 16
  %v1313 = vld [vmem:[%s1312] sm:$0xf]
  %v1314 = vunpack.c.l.bf16 %v1313
  %v1315 = vadd.f32 %v1263, %v31
  %v1316 = vmul.f32 %v1288, %v1315
  %v1317 = vadd.f32 %v1314, %v1316
  %v1318 = vtanh.pop %v1317
  %v1319 = vsub.f32 1.0, %v1311
  %v1320 = vmul.f32 %v1319, %v1318
  %v1321 = vmul.f32 %v1311, %v1063
  %v1322 = vadd.f32 %v1320, %v1321
  %s1323 = scalar_lea.vmem %s6, 32
  %1324 = vst [vmem:[%s1323] sm:$0xff] %v1322
  %v1325 = vpack.c.bf16 %v1322, %v1322
  %v1326 = vld [vmem:[%s4] sm:$0xff]
  %v1327 = vld [vmem:[%s4 + $0x8] sm:$0xf]
  %v1328 = vld [vmem:[%s4 + $0xc] sm:$0xff]
  %v1329 = vld [vmem:[%s4 + $0x14] sm:$0xf]
  %v1330 = vld [vmem:[%s4 + $0x18] sm:$0xff]
  %v1331 = vld [vmem:[%s4 + $0x20] sm:$0xf]
  %v1332 = vld [vmem:[%s4 + $0x24] sm:$0xff]
  %v1333 = vld [vmem:[%s4 + $0x2c] sm:$0xf]
  %v1334 = vld [vmem:[%s4 + $0x30] sm:$0xff]
  %v1335 = vld [vmem:[%s4 + $0x38] sm:$0xf]
  %v1336 = vld [vmem:[%s4 + $0x3c] sm:$0xff]
  %v1337 = vld [vmem:[%s4 + $0x44] sm:$0xf]
  %v1338 = vld [vmem:[%s4 + $0x48] sm:$0xff]
  %v1339 = vld [vmem:[%s4 + $0x50] sm:$0xf]
  %v1340 = vld [vmem:[%s4 + $0x54] sm:$0xff]
  %v1341 = vld [vmem:[%s4 + $0x5c] sm:$0xf]
  %v1342 = vld [vmem:[%s4 + $0x60] sm:$0xff]
  %v1343 = vld [vmem:[%s4 + $0x68] sm:$0xf]
  %v1344 = vld [vmem:[%s4 + $0x6c] sm:$0xff]
  %v1345 = vld [vmem:[%s4 + $0x74] sm:$0xf]
  %v1346 = vld [vmem:[%s4 + $0x78] sm:$0xff]
  %v1347 = vld [vmem:[%s4 + $0x80] sm:$0xf]
  %v1348 = vld [vmem:[%s4 + $0x84] sm:$0xff]
  %v1349 = vld [vmem:[%s4 + $0x8c] sm:$0xf]
  %v1350 = vld [vmem:[%s4 + $0x90] sm:$0xff]
  %v1351 = vld [vmem:[%s4 + $0x98] sm:$0xf]
  %v1352 = vld [vmem:[%s4 + $0x9c] sm:$0xff]
  %v1353 = vld [vmem:[%s4 + $0xa4] sm:$0xf]
  %v1354 = vld [vmem:[%s4 + $0xa8] sm:$0xff]
  %v1355 = vld [vmem:[%s4 + $0xb0] sm:$0xf]
  %v1356 = vld [vmem:[%s4 + $0xb4] sm:$0xff]
  %v1357 = vld [vmem:[%s4 + $0xbc] sm:$0xf]
  %v1390 = vunpack.c.l.b16 %v1326
  %v1391 = vunpack.c.h.b16 %v1326
  %v1392 = vunpack.c.l.b16 %v1327
  %v1393 = vunpack.c.l.b16 %v1328
  %v1394 = vunpack.c.h.b16 %v1328
  %v1395 = vunpack.c.l.b16 %v1329
  %v1396 = vunpack.c.l.b16 %v1330
  %v1397 = vunpack.c.h.b16 %v1330
  %v1398 = vunpack.c.l.b16 %v1331
  %v1399 = vunpack.c.l.b16 %v1332
  %v1400 = vunpack.c.h.b16 %v1332
  %v1401 = vunpack.c.l.b16 %v1333
  %v1402 = vunpack.c.l.b16 %v1334
  %v1403 = vunpack.c.h.b16 %v1334
  %v1404 = vunpack.c.l.b16 %v1335
  %v1405 = vunpack.c.l.b16 %v1336
  %v1406 = vunpack.c.h.b16 %v1336
  %v1407 = vunpack.c.l.b16 %v1337
  %v1408 = vunpack.c.l.b16 %v1338
  %v1409 = vunpack.c.h.b16 %v1338
  %v1410 = vunpack.c.l.b16 %v1339
  %v1411 = vunpack.c.l.b16 %v1340
  %v1412 = vunpack.c.h.b16 %v1340
  %v1413 = vunpack.c.l.b16 %v1341
  %v1414 = vunpack.c.l.b16 %v1342
  %v1415 = vunpack.c.h.b16 %v1342
  %v1416 = vunpack.c.l.b16 %v1343
  %v1417 = vunpack.c.l.b16 %v1344
  %v1418 = vunpack.c.h.b16 %v1344
  %v1419 = vunpack.c.l.b16 %v1345
  %v1420 = vunpack.c.l.b16 %v1346
  %v1421 = vunpack.c.h.b16 %v1346
  %v1422 = vunpack.c.l.b16 %v1347
  %v1423 = vunpack.c.l.b16 %v1348
  %v1424 = vunpack.c.h.b16 %v1348
  %v1425 = vunpack.c.l.b16 %v1349
  %v1426 = vunpack.c.l.b16 %v1350
  %v1427 = vunpack.c.h.b16 %v1350
  %v1428 = vunpack.c.l.b16 %v1351
  %v1429 = vunpack.c.l.b16 %v1352
  %v1430 = vunpack.c.h.b16 %v1352
  %v1431 = vunpack.c.l.b16 %v1353
  %v1432 = vunpack.c.l.b16 %v1354
  %v1433 = vunpack.c.h.b16 %v1354
  %v1434 = vunpack.c.l.b16 %v1355
  %v1435 = vunpack.c.l.b16 %v1356
  %v1436 = vunpack.c.h.b16 %v1356
  %v1437 = vunpack.c.l.b16 %v1357
  %v1438 = vpack.c.b16 %v1393, %v1390
  %v1439 = vpack.c.b16 %v1394, %v1391
  %v1440 = vpack.c.b16 %v1395, %v1392
  %v1441 = vpack.c.b16 %v1399, %v1396
  %v1442 = vpack.c.b16 %v1400, %v1397
  %v1443 = vpack.c.b16 %v1401, %v1398
  %v1444 = vpack.c.b16 %v1405, %v1402
  %v1445 = vpack.c.b16 %v1406, %v1403
  %v1446 = vpack.c.b16 %v1407, %v1404
  %v1447 = vpack.c.b16 %v1411, %v1408
  %v1448 = vpack.c.b16 %v1412, %v1409
  %v1449 = vpack.c.b16 %v1413, %v1410
  %v1450 = vpack.c.b16 %v1417, %v1414
  %v1451 = vpack.c.b16 %v1418, %v1415
  %v1452 = vpack.c.b16 %v1419, %v1416
  %v1453 = vpack.c.b16 %v1423, %v1420
  %v1454 = vpack.c.b16 %v1424, %v1421
  %v1455 = vpack.c.b16 %v1425, %v1422
  %v1456 = vpack.c.b16 %v1429, %v1426
  %v1457 = vpack.c.b16 %v1430, %v1427
  %v1458 = vpack.c.b16 %v1431, %v1428
  %v1459 = vpack.c.b16 %v1435, %v1432
  %v1460 = vpack.c.b16 %v1436, %v1433
  %v1461 = vpack.c.b16 %v1437, %v1434
  %1486 = vmatpush.bf16.msra.mxu0 %v1459
  %1487 = vmatpush.bf16.msra.mxu0 %v1456
  %1488 = vmatpush.bf16.msra.mxu0 %v1453
  %1489 = vmatpush.bf16.msra.mxu0 %v1450
  %1490 = vmatpush.bf16.msra.mxu0 %v1447
  %1491 = vmatpush.bf16.msra.mxu0 %v1444
  %1492 = vmatpush.bf16.msra.mxu0 %v1441
  %1493 = vmatpush.bf16.msra.mxu0 %v1438
  %1494 = vmatmul.bf16.gmra.mxu0 %v1325
  %v1495 = vpop.f32.mrf.mxu0
  %v1496 = vadd.f32 0.0, %v1495
  %v1497 = vpop.f32.mrf.mxu0
  %1498 = vdwg.mxu0
  %1499 = vmatpush.bf16.msra.mxu0 %v1460
  %1500 = vmatpush.bf16.msra.mxu0 %v1457
  %1501 = vmatpush.bf16.msra.mxu0 %v1454
  %1502 = vmatpush.bf16.msra.mxu0 %v1451
  %1503 = vmatpush.bf16.msra.mxu0 %v1448
  %1504 = vmatpush.bf16.msra.mxu0 %v1445
  %1505 = vmatpush.bf16.msra.mxu0 %v1442
  %1506 = vmatpush.bf16.msra.mxu0 %v1439
  %1507 = vmatmul.bf16.gmra.mxu0 %v1325
  %v1508 = vpop.f32.mrf.mxu0
  %v1509 = vadd.f32 0.0, %v1508
  %v1510 = vpop.f32.mrf.mxu0
  %1511 = vdwg.mxu0
  %1512 = vmatpush.bf16.msra.mxu0 %v1461
  %1513 = vmatpush.bf16.msra.mxu0 %v1458
  %1514 = vmatpush.bf16.msra.mxu0 %v1455
  %1515 = vmatpush.bf16.msra.mxu0 %v1452
  %1516 = vmatpush.bf16.msra.mxu0 %v1449
  %1517 = vmatpush.bf16.msra.mxu0 %v1446
  %1518 = vmatpush.bf16.msra.mxu0 %v1443
  %1519 = vmatpush.bf16.msra.mxu0 %v1440
  %1520 = vmatmul.bf16.gmra.mxu0 %v1325
  %v1521 = vpop.f32.mrf.mxu0
  %v1522 = vadd.f32 0.0, %v1521
  %v1523 = vpop.f32.mrf.mxu0
  %1524 = vdwg.mxu0
  %s1525 = scalar_lea.vmem %s1, 20
  %v1526 = vld [vmem:[%s1525] sm:$0xf]
  %v1527 = vunpack.c.l.bf16 %v1526
  %v1528 = vadd.f32 %v1527, %v1496
  %v1529 = vxor.u32 %v1528, 2147483648
  %v1530 = vmul.f32 %v1529, 1.442695
  %v1531 = vpow.pop %v1530
  %v1532 = vadd.f32 %v1531, 1.0
  %v1533 = vrcp.pop %v1532
  %v1534 = vmul.f32 %v1532, %v1533
  %v1535 = vsub.f32 1.0, %v1534
  %v1536 = vmul.f32 %v1533, %v1535
  %v1537 = vadd.f32 %v1533, %v1536
  %vm1538 = vweird.f32 %v1532
  %vm1539 = vweird.f32 %v1533
  %vm1540 = vmor %vm1538, %vm1539
  %v1541 = vsel %vm1540, %v1533, %v1537
  %v1542 = vand.u32 2147483647, %v1532
  %vm1543 = vcmp.eq.f32.partialorder %v1542, 8.507059e+37
  %v1544 = vand.u32 %v1532, 2147483648
  %v1545 = vor.u32 1.1754944e-38, %v1544
  %v1546 = vsel %vm1543, %v1545, %v1541
  %v1547 = vmul.f32 1.0, %v1546
  %s1548 = scalar_lea.vmem %s2, 20
  %v1549 = vld [vmem:[%s1548] sm:$0xf]
  %v1550 = vunpack.c.l.bf16 %v1549
  %v1551 = vadd.f32 %v1550, %v1509
  %v1552 = vxor.u32 %v1551, 2147483648
  %v1553 = vmul.f32 %v1552, 1.442695
  %v1554 = vpow.pop %v1553
  %v1555 = vadd.f32 %v1554, 1.0
  %v1556 = vrcp.pop %v1555
  %v1557 = vmul.f32 %v1555, %v1556
  %v1558 = vsub.f32 1.0, %v1557
  %v1559 = vmul.f32 %v1556, %v1558
  %v1560 = vadd.f32 %v1556, %v1559
  %vm1561 = vweird.f32 %v1555
  %vm1562 = vweird.f32 %v1556
  %vm1563 = vmor %vm1561, %vm1562
  %v1564 = vsel %vm1563, %v1556, %v1560
  %v1565 = vand.u32 2147483647, %v1555
  %vm1566 = vcmp.eq.f32.partialorder %v1565, 8.507059e+37
  %v1567 = vand.u32 %v1555, 2147483648
  %v1568 = vor.u32 1.1754944e-38, %v1567
  %v1569 = vsel %vm1566, %v1568, %v1564
  %v1570 = vmul.f32 1.0, %v1569
  %s1571 = scalar_lea.vmem %s3, 20
  %v1572 = vld [vmem:[%s1571] sm:$0xf]
  %v1573 = vunpack.c.l.bf16 %v1572
  %v1574 = vadd.f32 %v1522, %v31
  %v1575 = vmul.f32 %v1547, %v1574
  %v1576 = vadd.f32 %v1573, %v1575
  %v1577 = vtanh.pop %v1576
  %v1578 = vsub.f32 1.0, %v1570
  %v1579 = vmul.f32 %v1578, %v1577
  %v1580 = vmul.f32 %v1570, %v1322
  %v1581 = vadd.f32 %v1579, %v1580
  %s1582 = scalar_lea.vmem %s6, 40
  %1583 = vst [vmem:[%s1582] sm:$0xff] %v1581
  %v1584 = vpack.c.bf16 %v1581, %v1581
  %v1585 = vld [vmem:[%s4] sm:$0xff]
  %v1586 = vld [vmem:[%s4 + $0x8] sm:$0xf]
  %v1587 = vld [vmem:[%s4 + $0xc] sm:$0xff]
  %v1588 = vld [vmem:[%s4 + $0x14] sm:$0xf]
  %v1589 = vld [vmem:[%s4 + $0x18] sm:$0xff]
  %v1590 = vld [vmem:[%s4 + $0x20] sm:$0xf]
  %v1591 = vld [vmem:[%s4 + $0x24] sm:$0xff]
  %v1592 = vld [vmem:[%s4 + $0x2c] sm:$0xf]
  %v1593 = vld [vmem:[%s4 + $0x30] sm:$0xff]
  %v1594 = vld [vmem:[%s4 + $0x38] sm:$0xf]
  %v1595 = vld [vmem:[%s4 + $0x3c] sm:$0xff]
  %v1596 = vld [vmem:[%s4 + $0x44] sm:$0xf]
  %v1597 = vld [vmem:[%s4 + $0x48] sm:$0xff]
  %v1598 = vld [vmem:[%s4 + $0x50] sm:$0xf]
  %v1599 = vld [vmem:[%s4 + $0x54] sm:$0xff]
  %v1600 = vld [vmem:[%s4 + $0x5c] sm:$0xf]
  %v1601 = vld [vmem:[%s4 + $0x60] sm:$0xff]
  %v1602 = vld [vmem:[%s4 + $0x68] sm:$0xf]
  %v1603 = vld [vmem:[%s4 + $0x6c] sm:$0xff]
  %v1604 = vld [vmem:[%s4 + $0x74] sm:$0xf]
  %v1605 = vld [vmem:[%s4 + $0x78] sm:$0xff]
  %v1606 = vld [vmem:[%s4 + $0x80] sm:$0xf]
  %v1607 = vld [vmem:[%s4 + $0x84] sm:$0xff]
  %v1608 = vld [vmem:[%s4 + $0x8c] sm:$0xf]
  %v1609 = vld [vmem:[%s4 + $0x90] sm:$0xff]
  %v1610 = vld [vmem:[%s4 + $0x98] sm:$0xf]
  %v1611 = vld [vmem:[%s4 + $0x9c] sm:$0xff]
  %v1612 = vld [vmem:[%s4 + $0xa4] sm:$0xf]
  %v1613 = vld [vmem:[%s4 + $0xa8] sm:$0xff]
  %v1614 = vld [vmem:[%s4 + $0xb0] sm:$0xf]
  %v1615 = vld [vmem:[%s4 + $0xb4] sm:$0xff]
  %v1616 = vld [vmem:[%s4 + $0xbc] sm:$0xf]
  %v1649 = vunpack.c.l.b16 %v1585
  %v1650 = vunpack.c.h.b16 %v1585
  %v1651 = vunpack.c.l.b16 %v1586
  %v1652 = vunpack.c.l.b16 %v1587
  %v1653 = vunpack.c.h.b16 %v1587
  %v1654 = vunpack.c.l.b16 %v1588
  %v1655 = vunpack.c.l.b16 %v1589
  %v1656 = vunpack.c.h.b16 %v1589
  %v1657 = vunpack.c.l.b16 %v1590
  %v1658 = vunpack.c.l.b16 %v1591
  %v1659 = vunpack.c.h.b16 %v1591
  %v1660 = vunpack.c.l.b16 %v1592
  %v1661 = vunpack.c.l.b16 %v1593
  %v1662 = vunpack.c.h.b16 %v1593
  %v1663 = vunpack.c.l.b16 %v1594
  %v1664 = vunpack.c.l.b16 %v1595
  %v1665 = vunpack.c.h.b16 %v1595
  %v1666 = vunpack.c.l.b16 %v1596
  %v1667 = vunpack.c.l.b16 %v1597
  %v1668 = vunpack.c.h.b16 %v1597
  %v1669 = vunpack.c.l.b16 %v1598
  %v1670 = vunpack.c.l.b16 %v1599
  %v1671 = vunpack.c.h.b16 %v1599
  %v1672 = vunpack.c.l.b16 %v1600
  %v1673 = vunpack.c.l.b16 %v1601
  %v1674 = vunpack.c.h.b16 %v1601
  %v1675 = vunpack.c.l.b16 %v1602
  %v1676 = vunpack.c.l.b16 %v1603
  %v1677 = vunpack.c.h.b16 %v1603
  %v1678 = vunpack.c.l.b16 %v1604
  %v1679 = vunpack.c.l.b16 %v1605
  %v1680 = vunpack.c.h.b16 %v1605
  %v1681 = vunpack.c.l.b16 %v1606
  %v1682 = vunpack.c.l.b16 %v1607
  %v1683 = vunpack.c.h.b16 %v1607
  %v1684 = vunpack.c.l.b16 %v1608
  %v1685 = vunpack.c.l.b16 %v1609
  %v1686 = vunpack.c.h.b16 %v1609
  %v1687 = vunpack.c.l.b16 %v1610
  %v1688 = vunpack.c.l.b16 %v1611
  %v1689 = vunpack.c.h.b16 %v1611
  %v1690 = vunpack.c.l.b16 %v1612
  %v1691 = vunpack.c.l.b16 %v1613
  %v1692 = vunpack.c.h.b16 %v1613
  %v1693 = vunpack.c.l.b16 %v1614
  %v1694 = vunpack.c.l.b16 %v1615
  %v1695 = vunpack.c.h.b16 %v1615
  %v1696 = vunpack.c.l.b16 %v1616
  %v1697 = vpack.c.b16 %v1652, %v1649
  %v1698 = vpack.c.b16 %v1653, %v1650
  %v1699 = vpack.c.b16 %v1654, %v1651
  %v1700 = vpack.c.b16 %v1658, %v1655
  %v1701 = vpack.c.b16 %v1659, %v1656
  %v1702 = vpack.c.b16 %v1660, %v1657
  %v1703 = vpack.c.b16 %v1664, %v1661
  %v1704 = vpack.c.b16 %v1665, %v1662
  %v1705 = vpack.c.b16 %v1666, %v1663
  %v1706 = vpack.c.b16 %v1670, %v1667
  %v1707 = vpack.c.b16 %v1671, %v1668
  %v1708 = vpack.c.b16 %v1672, %v1669
  %v1709 = vpack.c.b16 %v1676, %v1673
  %v1710 = vpack.c.b16 %v1677, %v1674
  %v1711 = vpack.c.b16 %v1678, %v1675
  %v1712 = vpack.c.b16 %v1682, %v1679
  %v1713 = vpack.c.b16 %v1683, %v1680
  %v1714 = vpack.c.b16 %v1684, %v1681
  %v1715 = vpack.c.b16 %v1688, %v1685
  %v1716 = vpack.c.b16 %v1689, %v1686
  %v1717 = vpack.c.b16 %v1690, %v1687
  %v1718 = vpack.c.b16 %v1694, %v1691
  %v1719 = vpack.c.b16 %v1695, %v1692
  %v1720 = vpack.c.b16 %v1696, %v1693
  %1745 = vmatpush.bf16.msra.mxu0 %v1718
  %1746 = vmatpush.bf16.msra.mxu0 %v1715
  %1747 = vmatpush.bf16.msra.mxu0 %v1712
  %1748 = vmatpush.bf16.msra.mxu0 %v1709
  %1749 = vmatpush.bf16.msra.mxu0 %v1706
  %1750 = vmatpush.bf16.msra.mxu0 %v1703
  %1751 = vmatpush.bf16.msra.mxu0 %v1700
  %1752 = vmatpush.bf16.msra.mxu0 %v1697
  %1753 = vmatmul.bf16.gmra.mxu0 %v1584
  %v1754 = vpop.f32.mrf.mxu0
  %v1755 = vadd.f32 0.0, %v1754
  %v1756 = vpop.f32.mrf.mxu0
  %1757 = vdwg.mxu0
  %1758 = vmatpush.bf16.msra.mxu0 %v1719
  %1759 = vmatpush.bf16.msra.mxu0 %v1716
  %1760 = vmatpush.bf16.msra.mxu0 %v1713
  %1761 = vmatpush.bf16.msra.mxu0 %v1710
  %1762 = vmatpush.bf16.msra.mxu0 %v1707
  %1763 = vmatpush.bf16.msra.mxu0 %v1704
  %1764 = vmatpush.bf16.msra.mxu0 %v1701
  %1765 = vmatpush.bf16.msra.mxu0 %v1698
  %1766 = vmatmul.bf16.gmra.mxu0 %v1584
  %v1767 = vpop.f32.mrf.mxu0
  %v1768 = vadd.f32 0.0, %v1767
  %v1769 = vpop.f32.mrf.mxu0
  %1770 = vdwg.mxu0
  %1771 = vmatpush.bf16.msra.mxu0 %v1720
  %1772 = vmatpush.bf16.msra.mxu0 %v1717
  %1773 = vmatpush.bf16.msra.mxu0 %v1714
  %1774 = vmatpush.bf16.msra.mxu0 %v1711
  %1775 = vmatpush.bf16.msra.mxu0 %v1708
  %1776 = vmatpush.bf16.msra.mxu0 %v1705
  %1777 = vmatpush.bf16.msra.mxu0 %v1702
  %1778 = vmatpush.bf16.msra.mxu0 %v1699
  %1779 = vmatmul.bf16.gmra.mxu0 %v1584
  %v1780 = vpop.f32.mrf.mxu0
  %v1781 = vadd.f32 0.0, %v1780
  %v1782 = vpop.f32.mrf.mxu0
  %1783 = vdwg.mxu0
  %s1784 = scalar_lea.vmem %s1, 24
  %v1785 = vld [vmem:[%s1784] sm:$0xf]
  %v1786 = vunpack.c.l.bf16 %v1785
  %v1787 = vadd.f32 %v1786, %v1755
  %v1788 = vxor.u32 %v1787, 2147483648
  %v1789 = vmul.f32 %v1788, 1.442695
  %v1790 = vpow.pop %v1789
  %v1791 = vadd.f32 %v1790, 1.0
  %v1792 = vrcp.pop %v1791
  %v1793 = vmul.f32 %v1791, %v1792
  %v1794 = vsub.f32 1.0, %v1793
  %v1795 = vmul.f32 %v1792, %v1794
  %v1796 = vadd.f32 %v1792, %v1795
  %vm1797 = vweird.f32 %v1791
  %vm1798 = vweird.f32 %v1792
  %vm1799 = vmor %vm1797, %vm1798
  %v1800 = vsel %vm1799, %v1792, %v1796
  %v1801 = vand.u32 2147483647, %v1791
  %vm1802 = vcmp.eq.f32.partialorder %v1801, 8.507059e+37
  %v1803 = vand.u32 %v1791, 2147483648
  %v1804 = vor.u32 1.1754944e-38, %v1803
  %v1805 = vsel %vm1802, %v1804, %v1800
  %v1806 = vmul.f32 1.0, %v1805
  %s1807 = scalar_lea.vmem %s2, 24
  %v1808 = vld [vmem:[%s1807] sm:$0xf]
  %v1809 = vunpack.c.l.bf16 %v1808
  %v1810 = vadd.f32 %v1809, %v1768
  %v1811 = vxor.u32 %v1810, 2147483648
  %v1812 = vmul.f32 %v1811, 1.442695
  %v1813 = vpow.pop %v1812
  %v1814 = vadd.f32 %v1813, 1.0
  %v1815 = vrcp.pop %v1814
  %v1816 = vmul.f32 %v1814, %v1815
  %v1817 = vsub.f32 1.0, %v1816
  %v1818 = vmul.f32 %v1815, %v1817
  %v1819 = vadd.f32 %v1815, %v1818
  %vm1820 = vweird.f32 %v1814
  %vm1821 = vweird.f32 %v1815
  %vm1822 = vmor %vm1820, %vm1821
  %v1823 = vsel %vm1822, %v1815, %v1819
  %v1824 = vand.u32 2147483647, %v1814
  %vm1825 = vcmp.eq.f32.partialorder %v1824, 8.507059e+37
  %v1826 = vand.u32 %v1814, 2147483648
  %v1827 = vor.u32 1.1754944e-38, %v1826
  %v1828 = vsel %vm1825, %v1827, %v1823
  %v1829 = vmul.f32 1.0, %v1828
  %s1830 = scalar_lea.vmem %s3, 24
  %v1831 = vld [vmem:[%s1830] sm:$0xf]
  %v1832 = vunpack.c.l.bf16 %v1831
  %v1833 = vadd.f32 %v1781, %v31
  %v1834 = vmul.f32 %v1806, %v1833
  %v1835 = vadd.f32 %v1832, %v1834
  %v1836 = vtanh.pop %v1835
  %v1837 = vsub.f32 1.0, %v1829
  %v1838 = vmul.f32 %v1837, %v1836
  %v1839 = vmul.f32 %v1829, %v1581
  %v1840 = vadd.f32 %v1838, %v1839
  %s1841 = scalar_lea.vmem %s6, 48
  %1842 = vst [vmem:[%s1841] sm:$0xff] %v1840
  %v1843 = vpack.c.bf16 %v1840, %v1840
  %v1844 = vld [vmem:[%s4] sm:$0xff]
  %v1845 = vld [vmem:[%s4 + $0x8] sm:$0xf]
  %v1846 = vld [vmem:[%s4 + $0xc] sm:$0xff]
  %v1847 = vld [vmem:[%s4 + $0x14] sm:$0xf]
  %v1848 = vld [vmem:[%s4 + $0x18] sm:$0xff]
  %v1849 = vld [vmem:[%s4 + $0x20] sm:$0xf]
  %v1850 = vld [vmem:[%s4 + $0x24] sm:$0xff]
  %v1851 = vld [vmem:[%s4 + $0x2c] sm:$0xf]
  %v1852 = vld [vmem:[%s4 + $0x30] sm:$0xff]
  %v1853 = vld [vmem:[%s4 + $0x38] sm:$0xf]
  %v1854 = vld [vmem:[%s4 + $0x3c] sm:$0xff]
  %v1855 = vld [vmem:[%s4 + $0x44] sm:$0xf]
  %v1856 = vld [vmem:[%s4 + $0x48] sm:$0xff]
  %v1857 = vld [vmem:[%s4 + $0x50] sm:$0xf]
  %v1858 = vld [vmem:[%s4 + $0x54] sm:$0xff]
  %v1859 = vld [vmem:[%s4 + $0x5c] sm:$0xf]
  %v1860 = vld [vmem:[%s4 + $0x60] sm:$0xff]
  %v1861 = vld [vmem:[%s4 + $0x68] sm:$0xf]
  %v1862 = vld [vmem:[%s4 + $0x6c] sm:$0xff]
  %v1863 = vld [vmem:[%s4 + $0x74] sm:$0xf]
  %v1864 = vld [vmem:[%s4 + $0x78] sm:$0xff]
  %v1865 = vld [vmem:[%s4 + $0x80] sm:$0xf]
  %v1866 = vld [vmem:[%s4 + $0x84] sm:$0xff]
  %v1867 = vld [vmem:[%s4 + $0x8c] sm:$0xf]
  %v1868 = vld [vmem:[%s4 + $0x90] sm:$0xff]
  %v1869 = vld [vmem:[%s4 + $0x98] sm:$0xf]
  %v1870 = vld [vmem:[%s4 + $0x9c] sm:$0xff]
  %v1871 = vld [vmem:[%s4 + $0xa4] sm:$0xf]
  %v1872 = vld [vmem:[%s4 + $0xa8] sm:$0xff]
  %v1873 = vld [vmem:[%s4 + $0xb0] sm:$0xf]
  %v1874 = vld [vmem:[%s4 + $0xb4] sm:$0xff]
  %v1875 = vld [vmem:[%s4 + $0xbc] sm:$0xf]
  %v1908 = vunpack.c.l.b16 %v1844
  %v1909 = vunpack.c.h.b16 %v1844
  %v1910 = vunpack.c.l.b16 %v1845
  %v1911 = vunpack.c.l.b16 %v1846
  %v1912 = vunpack.c.h.b16 %v1846
  %v1913 = vunpack.c.l.b16 %v1847
  %v1914 = vunpack.c.l.b16 %v1848
  %v1915 = vunpack.c.h.b16 %v1848
  %v1916 = vunpack.c.l.b16 %v1849
  %v1917 = vunpack.c.l.b16 %v1850
  %v1918 = vunpack.c.h.b16 %v1850
  %v1919 = vunpack.c.l.b16 %v1851
  %v1920 = vunpack.c.l.b16 %v1852
  %v1921 = vunpack.c.h.b16 %v1852
  %v1922 = vunpack.c.l.b16 %v1853
  %v1923 = vunpack.c.l.b16 %v1854
  %v1924 = vunpack.c.h.b16 %v1854
  %v1925 = vunpack.c.l.b16 %v1855
  %v1926 = vunpack.c.l.b16 %v1856
  %v1927 = vunpack.c.h.b16 %v1856
  %v1928 = vunpack.c.l.b16 %v1857
  %v1929 = vunpack.c.l.b16 %v1858
  %v1930 = vunpack.c.h.b16 %v1858
  %v1931 = vunpack.c.l.b16 %v1859
  %v1932 = vunpack.c.l.b16 %v1860
  %v1933 = vunpack.c.h.b16 %v1860
  %v1934 = vunpack.c.l.b16 %v1861
  %v1935 = vunpack.c.l.b16 %v1862
  %v1936 = vunpack.c.h.b16 %v1862
  %v1937 = vunpack.c.l.b16 %v1863
  %v1938 = vunpack.c.l.b16 %v1864
  %v1939 = vunpack.c.h.b16 %v1864
  %v1940 = vunpack.c.l.b16 %v1865
  %v1941 = vunpack.c.l.b16 %v1866
  %v1942 = vunpack.c.h.b16 %v1866
  %v1943 = vunpack.c.l.b16 %v1867
  %v1944 = vunpack.c.l.b16 %v1868
  %v1945 = vunpack.c.h.b16 %v1868
  %v1946 = vunpack.c.l.b16 %v1869
  %v1947 = vunpack.c.l.b16 %v1870
  %v1948 = vunpack.c.h.b16 %v1870
  %v1949 = vunpack.c.l.b16 %v1871
  %v1950 = vunpack.c.l.b16 %v1872
  %v1951 = vunpack.c.h.b16 %v1872
  %v1952 = vunpack.c.l.b16 %v1873
  %v1953 = vunpack.c.l.b16 %v1874
  %v1954 = vunpack.c.h.b16 %v1874
  %v1955 = vunpack.c.l.b16 %v1875
  %v1956 = vpack.c.b16 %v1911, %v1908
  %v1957 = vpack.c.b16 %v1912, %v1909
  %v1958 = vpack.c.b16 %v1913, %v1910
  %v1959 = vpack.c.b16 %v1917, %v1914
  %v1960 = vpack.c.b16 %v1918, %v1915
  %v1961 = vpack.c.b16 %v1919, %v1916
  %v1962 = vpack.c.b16 %v1923, %v1920
  %v1963 = vpack.c.b16 %v1924, %v1921
  %v1964 = vpack.c.b16 %v1925, %v1922
  %v1965 = vpack.c.b16 %v1929, %v1926
  %v1966 = vpack.c.b16 %v1930, %v1927
  %v1967 = vpack.c.b16 %v1931, %v1928
  %v1968 = vpack.c.b16 %v1935, %v1932
  %v1969 = vpack.c.b16 %v1936, %v1933
  %v1970 = vpack.c.b16 %v1937, %v1934
  %v1971 = vpack.c.b16 %v1941, %v1938
  %v1972 = vpack.c.b16 %v1942, %v1939
  %v1973 = vpack.c.b16 %v1943, %v1940
  %v1974 = vpack.c.b16 %v1947, %v1944
  %v1975 = vpack.c.b16 %v1948, %v1945
  %v1976 = vpack.c.b16 %v1949, %v1946
  %v1977 = vpack.c.b16 %v1953, %v1950
  %v1978 = vpack.c.b16 %v1954, %v1951
  %v1979 = vpack.c.b16 %v1955, %v1952
  %2004 = vmatpush.bf16.msra.mxu0 %v1977
  %2005 = vmatpush.bf16.msra.mxu0 %v1974
  %2006 = vmatpush.bf16.msra.mxu0 %v1971
  %2007 = vmatpush.bf16.msra.mxu0 %v1968
  %2008 = vmatpush.bf16.msra.mxu0 %v1965
  %2009 = vmatpush.bf16.msra.mxu0 %v1962
  %2010 = vmatpush.bf16.msra.mxu0 %v1959
  %2011 = vmatpush.bf16.msra.mxu0 %v1956
  %2012 = vmatmul.bf16.gmra.mxu0 %v1843
  %v2013 = vpop.f32.mrf.mxu0
  %v2014 = vadd.f32 0.0, %v2013
  %v2015 = vpop.f32.mrf.mxu0
  %2016 = vdwg.mxu0
  %2017 = vmatpush.bf16.msra.mxu0 %v1978
  %2018 = vmatpush.bf16.msra.mxu0 %v1975
  %2019 = vmatpush.bf16.msra.mxu0 %v1972
  %2020 = vmatpush.bf16.msra.mxu0 %v1969
  %2021 = vmatpush.bf16.msra.mxu0 %v1966
  %2022 = vmatpush.bf16.msra.mxu0 %v1963
  %2023 = vmatpush.bf16.msra.mxu0 %v1960
  %2024 = vmatpush.bf16.msra.mxu0 %v1957
  %2025 = vmatmul.bf16.gmra.mxu0 %v1843
  %v2026 = vpop.f32.mrf.mxu0
  %v2027 = vadd.f32 0.0, %v2026
  %v2028 = vpop.f32.mrf.mxu0
  %2029 = vdwg.mxu0
  %2030 = vmatpush.bf16.msra.mxu0 %v1979
  %2031 = vmatpush.bf16.msra.mxu0 %v1976
  %2032 = vmatpush.bf16.msra.mxu0 %v1973
  %2033 = vmatpush.bf16.msra.mxu0 %v1970
  %2034 = vmatpush.bf16.msra.mxu0 %v1967
  %2035 = vmatpush.bf16.msra.mxu0 %v1964
  %2036 = vmatpush.bf16.msra.mxu0 %v1961
  %2037 = vmatpush.bf16.msra.mxu0 %v1958
  %2038 = vmatmul.bf16.gmra.mxu0 %v1843
  %v2039 = vpop.f32.mrf.mxu0
  %v2040 = vadd.f32 0.0, %v2039
  %v2041 = vpop.f32.mrf.mxu0
  %2042 = vdwg.mxu0
  %s2043 = scalar_lea.vmem %s1, 28
  %v2044 = vld [vmem:[%s2043] sm:$0xf]
  %v2045 = vunpack.c.l.bf16 %v2044
  %v2046 = vadd.f32 %v2045, %v2014
  %v2047 = vxor.u32 %v2046, 2147483648
  %v2048 = vmul.f32 %v2047, 1.442695
  %v2049 = vpow.pop %v2048
  %v2050 = vadd.f32 %v2049, 1.0
  %v2051 = vrcp.pop %v2050
  %v2052 = vmul.f32 %v2050, %v2051
  %v2053 = vsub.f32 1.0, %v2052
  %v2054 = vmul.f32 %v2051, %v2053
  %v2055 = vadd.f32 %v2051, %v2054
  %vm2056 = vweird.f32 %v2050
  %vm2057 = vweird.f32 %v2051
  %vm2058 = vmor %vm2056, %vm2057
  %v2059 = vsel %vm2058, %v2051, %v2055
  %v2060 = vand.u32 2147483647, %v2050
  %vm2061 = vcmp.eq.f32.partialorder %v2060, 8.507059e+37
  %v2062 = vand.u32 %v2050, 2147483648
  %v2063 = vor.u32 1.1754944e-38, %v2062
  %v2064 = vsel %vm2061, %v2063, %v2059
  %v2065 = vmul.f32 1.0, %v2064
  %s2066 = scalar_lea.vmem %s2, 28
  %v2067 = vld [vmem:[%s2066] sm:$0xf]
  %v2068 = vunpack.c.l.bf16 %v2067
  %v2069 = vadd.f32 %v2068, %v2027
  %v2070 = vxor.u32 %v2069, 2147483648
  %v2071 = vmul.f32 %v2070, 1.442695
  %v2072 = vpow.pop %v2071
  %v2073 = vadd.f32 %v2072, 1.0
  %v2074 = vrcp.pop %v2073
  %v2075 = vmul.f32 %v2073, %v2074
  %v2076 = vsub.f32 1.0, %v2075
  %v2077 = vmul.f32 %v2074, %v2076
  %v2078 = vadd.f32 %v2074, %v2077
  %vm2079 = vweird.f32 %v2073
  %vm2080 = vweird.f32 %v2074
  %vm2081 = vmor %vm2079, %vm2080
  %v2082 = vsel %vm2081, %v2074, %v2078
  %v2083 = vand.u32 2147483647, %v2073
  %vm2084 = vcmp.eq.f32.partialorder %v2083, 8.507059e+37
  %v2085 = vand.u32 %v2073, 2147483648
  %v2086 = vor.u32 1.1754944e-38, %v2085
  %v2087 = vsel %vm2084, %v2086, %v2082
  %v2088 = vmul.f32 1.0, %v2087
  %s2089 = scalar_lea.vmem %s3, 28
  %v2090 = vld [vmem:[%s2089] sm:$0xf]
  %v2091 = vunpack.c.l.bf16 %v2090
  %v2092 = vadd.f32 %v2040, %v31
  %v2093 = vmul.f32 %v2065, %v2092
  %v2094 = vadd.f32 %v2091, %v2093
  %v2095 = vtanh.pop %v2094
  %v2096 = vsub.f32 1.0, %v2088
  %v2097 = vmul.f32 %v2096, %v2095
  %v2098 = vmul.f32 %v2088, %v1840
  %v2099 = vadd.f32 %v2097, %v2098
  %s2100 = scalar_lea.vmem %s6, 56
  %2101 = vst [vmem:[%s2100] sm:$0xff] %v2099
  %2102 = vst [vmem:[#allocation2] sm:$0xff] %v2099
  // Predicated region
  $region30: #{gru_model_forward.1} parent=0 // pred_check
    _
  $region31: #{gru_model_forward.1} parent=0 // pred_check_branch
    %2104 = sbr.rel (0) target = $region33
  $region32: #{gru_model_forward.1} parent=0 // pred_region
    _
  $region33: #{gru_model_forward.1} parent=0 // pred_fallthru
    _
  // Predicated region
  $region34: #{gru_model_forward.1} parent=0 // pred_check
    _
  $region35: #{gru_model_forward.1} parent=0 // pred_check_branch
    %2106 = sbr.rel (0) target = $region37
  $region36: #{gru_model_forward.1} parent=0 // pred_region
    _
  $region37: #{gru_model_forward.1} parent=0 // pred_fallthru
    _

</llo_original>
